<compile_context>
chip_gen: v5e
topology: v5e:2x2
jax: 0.10.0
libtpu: 0.0.40
codegen_flags: <defaults>
</compile_context>

<pallas_src>
import jax
import jax.numpy as jnp
from jax.experimental import pallas as pl
from jax.experimental.pallas import tpu as pltpu

Z_DIM = 64
HIDDEN = 256
IMAGE_DIM = 28 * 28 * 1          # 784
IMAGE_DIM_PAD = 896              # 7 * 128 : lane-dense output width
BATCH_TILE = 256                 # multiple of 256 (v6e/v7x MXU) and 128 (v5e)


def generator_kernel(x_ref, w1_ref, b1_ref, w2_ref, b2_ref, o_ref):
    # First linear: [TB, Z] @ [Z, H] -> [TB, H]   (MXU, bf16 in, f32 acc)
    h = jnp.dot(x_ref[...], w1_ref[...], preferred_element_type=jnp.float32)
    h = h + b1_ref[...]                              # broadcast [1, H]
    # LeakyReLU(0.1): max(h, 0.1*h) -- identical for slope < 1, one VPU op fewer.
    h = jnp.maximum(h, 0.1 * h)
    # Second linear: [TB, H] @ [H, IMG_PAD] -> [TB, IMG_PAD]
    # Cast h to bf16 for the big matmul; keep f32 accumulation.
    y = jnp.dot(h.astype(jnp.bfloat16), w2_ref[...],
                preferred_element_type=jnp.float32)
    y = y + b2_ref[...]                              # broadcast [1, IMG_PAD]
    # Tanh (EUP), store f32 lane-dense tile.
    o_ref[...] = jnp.tanh(y)


def generator_forward(x, w1, b1, w2, b2, *, batch_tile=BATCH_TILE):
    """x: [B, Z_DIM] f32; w1: [Z_DIM, HIDDEN]; b1: [1, HIDDEN];
    w2: [HIDDEN, IMAGE_DIM]; b2: [1, IMAGE_DIM].  Returns [B, IMAGE_DIM] f32."""
    B = x.shape[0]

    # Pad batch up to a multiple of the batch tile so the MXU M-dim is full
    # and the weight DMA is amortized over many rows.
    b_pad = ((B + batch_tile - 1) // batch_tile) * batch_tile
    if b_pad != B:
        x = jnp.pad(x, ((0, b_pad - B), (0, 0)))

    # Zero-pad the output feature dim 784 -> 896 for lane-dense stores.
    w2p = jnp.pad(w2, ((0, 0), (0, IMAGE_DIM_PAD - IMAGE_DIM)))
    b2p = jnp.pad(b2, ((0, 0), (0, IMAGE_DIM_PAD - IMAGE_DIM)))

    # bf16 matmul inputs (halves weight HBM traffic, 2x MXU on v6e/v7x);
    # biases stay f32 for the f32 epilogue.
    x_bf = x.astype(jnp.bfloat16)
    w1_bf = w1.astype(jnp.bfloat16)
    w2_bf = w2p.astype(jnp.bfloat16)

    grid = (b_pad // batch_tile,)

    out = pl.pallas_call(
        generator_kernel,
        out_shape=jax.ShapeDtypeStruct((b_pad, IMAGE_DIM_PAD), jnp.float32),
        grid_spec=pltpu.PrefetchScalarGridSpec(
            num_scalar_prefetch=0,
            grid=grid,
            in_specs=[
                # x: tiled over batch (double-buffered by the pipeline)
                pl.BlockSpec((batch_tile, Z_DIM), lambda i: (i, 0)),
                # weights / biases: constant block index -> VMEM-resident
                pl.BlockSpec((Z_DIM, HIDDEN), lambda i: (0, 0)),
                pl.BlockSpec((1, HIDDEN), lambda i: (0, 0)),
                pl.BlockSpec((HIDDEN, IMAGE_DIM_PAD), lambda i: (0, 0)),
                pl.BlockSpec((1, IMAGE_DIM_PAD), lambda i: (0, 0)),
            ],
            out_specs=pl.BlockSpec((batch_tile, IMAGE_DIM_PAD),
                                   lambda i: (i, 0)),
        ),
        compiler_params=pltpu.CompilerParams(
            # Batch tiles are independent -> shard across v7x's 2 TCs
            # (no-op on v5e/v6e single-TC chips).
            dimension_semantics=("parallel",),
        ),
    )(x_bf, w1_bf, b1, w2_bf, b2p)

    # Drop batch padding and the 784->896 lane padding.
    return out[:B, :IMAGE_DIM]


def init_params(key):
    """Deterministic PyTorch-style init: U(-1/sqrt(fan_in), 1/sqrt(fan_in))."""
    k1, k2, k3, k4 = jax.random.split(key, 4)
    bound1 = 1.0 / (Z_DIM ** 0.5)
    bound2 = 1.0 / (HIDDEN ** 0.5)
    # stored transposed relative to torch: [in, out]
    w1 = jax.random.uniform(k1, (Z_DIM, HIDDEN), jnp.float32, -bound1, bound1)
    b1 = jax.random.uniform(k2, (1, HIDDEN), jnp.float32, -bound1, bound1)
    w2 = jax.random.uniform(k3, (HIDDEN, IMAGE_DIM), jnp.float32, -bound2, bound2)
    b2 = jax.random.uniform(k4, (1, IMAGE_DIM), jnp.float32, -bound2, bound2)
    return w1, b1, w2, b2


if __name__ == "__main__":
    key = jax.random.PRNGKey(0)
    k_param, k_x = jax.random.split(key)
    w1, b1, w2, b2 = init_params(k_param)

    batch = 8
    x = jax.random.normal(k_x, (batch, Z_DIM), jnp.float32)  # latent noise z

    out = generator_forward(x, w1, b1, w2, b2)
    out = jax.block_until_ready(out)

    # Sanity check against a plain-JAX f32 reference of the same forward pass.
    # (Kernel runs matmuls in bf16 with f32 accumulation -> loosened tolerance;
    # tanh output is bounded in [-1, 1], so absolute tolerance is meaningful.)
    h_ref = x @ w1 + b1
    h_ref = jnp.where(h_ref > 0, h_ref, 0.1 * h_ref)
    ref = jnp.tanh(h_ref @ w2 + b2)
    assert out.shape == (batch, IMAGE_DIM)
    assert jnp.allclose(out, ref, atol=2e-2, rtol=2e-2), (
        f"max abs err = {jnp.max(jnp.abs(out - ref))}")

    print("KERNEL_OK")
</pallas_src>

<mosaic_0001>
module attributes {stable_mosaic.version = 11 : i64} {
  func.func @generator_kernel(%arg0: i32, %arg1: memref<256x64xbf16, #tpu.memory_space<vmem>>, %arg2: memref<64x256xbf16, #tpu.memory_space<vmem>>, %arg3: memref<1x256xf32, #tpu.memory_space<vmem>>, %arg4: memref<256x896xbf16, #tpu.memory_space<vmem>>, %arg5: memref<1x896xf32, #tpu.memory_space<vmem>>, %arg6: memref<256x896xf32, #tpu.memory_space<vmem>>) attributes {dimension_semantics = [#tpu.dimension_semantics<parallel>], iteration_bounds = array<i64: 1>, scalar_prefetch = 0 : i64, scratch_operands = 0 : i64, tpu.core_type = #tpu.core_type<tc>, window_params = [{transform_indices = @transform_0, window_bounds = array<i64: 256, 64>}, {pipeline_mode = #tpu.pipeline_mode<synchronous>, transform_indices = @transform_1, window_bounds = array<i64: 64, 256>}, {pipeline_mode = #tpu.pipeline_mode<synchronous>, transform_indices = @transform_2, window_bounds = array<i64: 1, 256>}, {pipeline_mode = #tpu.pipeline_mode<synchronous>, transform_indices = @transform_3, window_bounds = array<i64: 256, 896>}, {pipeline_mode = #tpu.pipeline_mode<synchronous>, transform_indices = @transform_4, window_bounds = array<i64: 1, 896>}, {transform_indices = @transform_5, window_bounds = array<i64: 256, 896>}]} {
    %c0 = arith.constant 0 : index
    %c0_0 = arith.constant 0 : index
    %0 = vector.load %arg1[%c0, %c0_0] : memref<256x64xbf16, #tpu.memory_space<vmem>>, vector<256x64xbf16>
    %c0_1 = arith.constant 0 : index
    %c0_2 = arith.constant 0 : index
    %1 = vector.load %arg2[%c0_1, %c0_2] : memref<64x256xbf16, #tpu.memory_space<vmem>>, vector<64x256xbf16>
    %cst = arith.constant dense<0.000000e+00> : vector<256x256xf32>
    %2 = tpu.matmul %0, %1, %cst {dimension_numbers = #tpu.dot_dimension_numbers<[1], [0], [0], [1], [0, 0, 1, 1], [], []>} : vector<256x64xbf16>, vector<64x256xbf16>, vector<256x256xf32> -> vector<256x256xf32>
    %c0_3 = arith.constant 0 : index
    %c0_4 = arith.constant 0 : index
    %3 = vector.load %arg3[%c0_3, %c0_4] : memref<1x256xf32, #tpu.memory_space<vmem>>, vector<1x256xf32>
    %4 = vector.broadcast %3 : vector<1x256xf32> to vector<256x256xf32>
    %5 = arith.addf %2, %4 : vector<256x256xf32>
    %cst_5 = arith.constant 1.000000e-01 : f32
    %6 = vector.broadcast %cst_5 : f32 to vector<256x256xf32>
    %7 = arith.mulf %6, %5 : vector<256x256xf32>
    %8 = arith.maximumf %5, %7 : vector<256x256xf32>
    %9 = arith.truncf %8 : vector<256x256xf32> to vector<256x256xbf16>
    %c0_6 = arith.constant 0 : index
    %c0_7 = arith.constant 0 : index
    %10 = vector.load %arg4[%c0_6, %c0_7] : memref<256x896xbf16, #tpu.memory_space<vmem>>, vector<256x896xbf16>
    %cst_8 = arith.constant dense<0.000000e+00> : vector<256x896xf32>
    %11 = tpu.matmul %9, %10, %cst_8 {dimension_numbers = #tpu.dot_dimension_numbers<[1], [0], [0], [1], [0, 0, 1, 1], [], []>} : vector<256x256xbf16>, vector<256x896xbf16>, vector<256x896xf32> -> vector<256x896xf32>
    %c0_9 = arith.constant 0 : index
    %c0_10 = arith.constant 0 : index
    %12 = vector.load %arg5[%c0_9, %c0_10] : memref<1x896xf32, #tpu.memory_space<vmem>>, vector<1x896xf32>
    %13 = vector.broadcast %12 : vector<1x896xf32> to vector<256x896xf32>
    %14 = arith.addf %11, %13 : vector<256x896xf32>
    %15 = math.tanh %14 : vector<256x896xf32>
    %c0_11 = arith.constant 0 : index
    %c0_12 = arith.constant 0 : index
    %16 = vector.load %arg6[%c0_11, %c0_12] : memref<256x896xf32, #tpu.memory_space<vmem>>, vector<256x896xf32>
    tpu.vector_store %arg6[%c0_11, %c0_12], %15 {strides = array<i32>} : memref<256x896xf32, #tpu.memory_space<vmem>>, vector<256x896xf32>,
    return
  }
  func.func @transform_0(%arg0: i32) -> (i32, i32) {
    %c0_i32 = arith.constant 0 : i32
    %c0_i32_0 = arith.constant 0 : i32
    return %arg0, %c0_i32 : i32, i32
  }
  func.func @transform_1(%arg0: i32) -> (i32, i32) {
    %c0_i32 = arith.constant 0 : i32
    %c0_i32_0 = arith.constant 0 : i32
    %c0_i32_1 = arith.constant 0 : i32
    return %c0_i32, %c0_i32_0 : i32, i32
  }
  func.func @transform_2(%arg0: i32) -> (i32, i32) {
    %c0_i32 = arith.constant 0 : i32
    %c0_i32_0 = arith.constant 0 : i32
    %c0_i32_1 = arith.constant 0 : i32
    return %c0_i32, %c0_i32_0 : i32, i32
  }
  func.func @transform_3(%arg0: i32) -> (i32, i32) {
    %c0_i32 = arith.constant 0 : i32
    %c0_i32_0 = arith.constant 0 : i32
    %c0_i32_1 = arith.constant 0 : i32
    return %c0_i32, %c0_i32_0 : i32, i32
  }
  func.func @transform_4(%arg0: i32) -> (i32, i32) {
    %c0_i32 = arith.constant 0 : i32
    %c0_i32_0 = arith.constant 0 : i32
    %c0_i32_1 = arith.constant 0 : i32
    return %c0_i32, %c0_i32_0 : i32, i32
  }
  func.func @transform_5(%arg0: i32) -> (i32, i32) {
    %c0_i32 = arith.constant 0 : i32
    %c0_i32_0 = arith.constant 0 : i32
    return %arg0, %c0_i32 : i32, i32
  }
}

</mosaic_0001>

<llo_original>
// kernel: tpu_custom_call.1
$region0: #{tpu_custom_call.1}
  #allocation0 [shape = 'u32[]', space=smem, size = 0x4, offset = 0x4, fixed_abs, tag = 'smem constant byte address 0x4 - core index']
  #allocation1 [shape = 'u32[72,128]{1,0:T(1,128)}', space=vmem, size = 0x9000, scoped, tag = 'internal scratch']
  %s0 = inlined_call_operand.vmem [shape: bf16[256,64], index: 0, kind: input, shape index: {}]
  %s1 = inlined_call_operand.vmem [shape: bf16[64,256], index: 1, kind: input, shape index: {}]
  %s2 = inlined_call_operand.vmem [shape: f32[1,256], index: 2, kind: input, shape index: {}]
  %s3 = inlined_call_operand.hbm [shape: bf16[256,896], index: 3, kind: input, shape index: {}]
  %s4 = inlined_call_operand.vmem [shape: f32[1,896], index: 4, kind: input, shape index: {}]
  %s5 = inlined_call_operand.hbm [shape: f32[256,896], index: 5, kind: output, shape index: {}]
  %s6 = sld [smem:[#allocation0]]
  $region34: #{tpu_custom_call.1} parent=0
    _
  %s8 = ssub.s32 1, %s6
  %s9 = scalar_select 0, %s8, %s6
  $region1: #{tpu_custom_call.1} parent=0
    #allocation2 [shape = 'u8[458752]{0}', space=vmem, size = 0x70000, scoped, tag = 'input window, operand 3, single buffered']
    #allocation3 [shape = 's32[1]{0}', space=sflag, size = 0x4, scoped, tag = 'scoped memory for tpu_custom_call.1']
    #allocation4 [shape = 's32[1]{0}', space=sflag, size = 0x4, scoped, tag = 'scoped memory for tpu_custom_call.1']
    #allocation5 [shape = 'u8[917504]{0}', space=vmem, size = 0xe0000, scoped, tag = 'output window, operand 0, single buffered']
    %10 = vsyncpa [#allocation3], 0
    %11 = vsyncpa [#allocation4], 0
    // Predicated region
    $region2: #{tpu_custom_call.1} parent=1 // pred_check
      _
    $region3: #{tpu_custom_call.1} parent=1 // pred_check_branch
      %13 = sbr.rel (0) target = $region5
    $region4: #{tpu_custom_call.1} parent=1 // pred_region
      _
    $region5: #{tpu_custom_call.1} parent=1 // pred_fallthru
      _
    // Predicated region
    $region6: #{tpu_custom_call.1} parent=1 // pred_check
      _
    $region7: #{tpu_custom_call.1} parent=1 // pred_check_branch
      %15 = sbr.rel (0) target = $region9
    $region8: #{tpu_custom_call.1} parent=1 // pred_region
      _
    $region9: #{tpu_custom_call.1} parent=1 // pred_fallthru
      _
    // Predicated region
    $region10: #{tpu_custom_call.1} parent=1 // pred_check
      _
    $region11: #{tpu_custom_call.1} parent=1 // pred_check_branch
      %17 = sbr.rel (0) target = $region13
    $region12: #{tpu_custom_call.1} parent=1 // pred_region
      _
    $region13: #{tpu_custom_call.1} parent=1 // pred_fallthru
      _
    // Predicated region
    $region14: #{tpu_custom_call.1} parent=1 // pred_check
      _
    $region15: #{tpu_custom_call.1} parent=1 // pred_check_branch
      %19 = sbr.rel (0) target = $region17
    $region16: #{tpu_custom_call.1} parent=1 // pred_region
      %21 = vsyncadd [#allocation3], 0
      %s22 = sshll.u32 %s3, 4
      %s23 = int_to_ptr.hbm [resolvable:$true] %s22
      %s24 = sshll.u32 [#allocation2], 4
      %s25 = int_to_ptr.vmem [resolvable:$true] %s24
      %30 = dma.hbm_to_vmem [thread:$0]  %s23, 14336, %s25, [#allocation3], 448, 448, 28
    $region17: #{tpu_custom_call.1} parent=1 // pred_fallthru
      _
    // Predicated region
    $region18: #{tpu_custom_call.1} parent=1 // pred_check
      _
    $region19: #{tpu_custom_call.1} parent=1 // pred_check_branch
      %32 = sbr.rel (0) target = $region21
    $region20: #{tpu_custom_call.1} parent=1 // pred_region
      _
    $region21: #{tpu_custom_call.1} parent=1 // pred_fallthru
      _
    // Predicated region
    $region22: #{tpu_custom_call.1} parent=1 // pred_check
      _
    $region23: #{tpu_custom_call.1} parent=1 // pred_check_branch
      %34 = sbr.rel (0) target = $region25
    $region24: #{tpu_custom_call.1} parent=1 // pred_region
      %36 = dma.done [#allocation3], 14336
    $region25: #{tpu_custom_call.1} parent=1 // pred_fallthru
      _
    %v38 = vld [vmem:[%s0] sm:$0xf]
    %v39 = vld [vmem:[%s0 + $0x4] sm:$0xf]
    %v40 = vld [vmem:[%s0 + $0x8] sm:$0xf]
    %v41 = vld [vmem:[%s0 + $0xc] sm:$0xf]
    %v42 = vld [vmem:[%s0 + $0x10] sm:$0xf]
    %v43 = vld [vmem:[%s0 + $0x14] sm:$0xf]
    %v44 = vld [vmem:[%s0 + $0x18] sm:$0xf]
    %v45 = vld [vmem:[%s0 + $0x1c] sm:$0xf]
    %v46 = vld [vmem:[%s0 + $0x20] sm:$0xf]
    %v47 = vld [vmem:[%s0 + $0x24] sm:$0xf]
    %v48 = vld [vmem:[%s0 + $0x28] sm:$0xf]
    %v49 = vld [vmem:[%s0 + $0x2c] sm:$0xf]
    %v50 = vld [vmem:[%s0 + $0x30] sm:$0xf]
    %v51 = vld [vmem:[%s0 + $0x34] sm:$0xf]
    %v52 = vld [vmem:[%s0 + $0x38] sm:$0xf]
    %v53 = vld [vmem:[%s0 + $0x3c] sm:$0xf]
    %v54 = vld [vmem:[%s0 + $0x40] sm:$0xf]
    %v55 = vld [vmem:[%s0 + $0x44] sm:$0xf]
    %v56 = vld [vmem:[%s0 + $0x48] sm:$0xf]
    %v57 = vld [vmem:[%s0 + $0x4c] sm:$0xf]
    %v58 = vld [vmem:[%s0 + $0x50] sm:$0xf]
    %v59 = vld [vmem:[%s0 + $0x54] sm:$0xf]
    %v60 = vld [vmem:[%s0 + $0x58] sm:$0xf]
    %v61 = vld [vmem:[%s0 + $0x5c] sm:$0xf]
    %v62 = vld [vmem:[%s0 + $0x60] sm:$0xf]
    %v63 = vld [vmem:[%s0 + $0x64] sm:$0xf]
    %v64 = vld [vmem:[%s0 + $0x68] sm:$0xf]
    %v65 = vld [vmem:[%s0 + $0x6c] sm:$0xf]
    %v66 = vld [vmem:[%s0 + $0x70] sm:$0xf]
    %v67 = vld [vmem:[%s0 + $0x74] sm:$0xf]
    %v68 = vld [vmem:[%s0 + $0x78] sm:$0xf]
    %v69 = vld [vmem:[%s0 + $0x7c] sm:$0xf]
    %v70 = vld [vmem:[%s1] sm:$0xff]
    %v71 = vld [vmem:[%s1 + $0x8] sm:$0xff]
    %v72 = vld [vmem:[%s1 + $0x10] sm:$0xff]
    %v73 = vld [vmem:[%s1 + $0x18] sm:$0xff]
    %v74 = vld [vmem:[%s1 + $0x20] sm:$0xff]
    %v75 = vld [vmem:[%s1 + $0x28] sm:$0xff]
    %v76 = vld [vmem:[%s1 + $0x30] sm:$0xff]
    %v77 = vld [vmem:[%s1 + $0x38] sm:$0xff]
    %v78 = vld [vmem:[%s2] sm:$0x3]
    %v80 = vperm.slane %v78, 0
    %v81 = vperm.slane %v78, 1
    %v116 = vunpack.c.l.b16 %v38
    %v117 = vunpack.c.l.b16 %v39
    %v118 = vunpack.c.l.b16 %v40
    %v119 = vunpack.c.l.b16 %v41
    %v120 = vunpack.c.l.b16 %v42
    %v121 = vunpack.c.l.b16 %v43
    %v122 = vunpack.c.l.b16 %v44
    %v123 = vunpack.c.l.b16 %v45
    %v124 = vunpack.c.l.b16 %v46
    %v125 = vunpack.c.l.b16 %v47
    %v126 = vunpack.c.l.b16 %v48
    %v127 = vunpack.c.l.b16 %v49
    %v128 = vunpack.c.l.b16 %v50
    %v129 = vunpack.c.l.b16 %v51
    %v130 = vunpack.c.l.b16 %v52
    %v131 = vunpack.c.l.b16 %v53
    %v132 = vunpack.c.l.b16 %v54
    %v133 = vunpack.c.l.b16 %v55
    %v134 = vunpack.c.l.b16 %v56
    %v135 = vunpack.c.l.b16 %v57
    %v136 = vunpack.c.l.b16 %v58
    %v137 = vunpack.c.l.b16 %v59
    %v138 = vunpack.c.l.b16 %v60
    %v139 = vunpack.c.l.b16 %v61
    %v140 = vunpack.c.l.b16 %v62
    %v141 = vunpack.c.l.b16 %v63
    %v142 = vunpack.c.l.b16 %v64
    %v143 = vunpack.c.l.b16 %v65
    %v144 = vunpack.c.l.b16 %v66
    %v145 = vunpack.c.l.b16 %v67
    %v146 = vunpack.c.l.b16 %v68
    %v147 = vunpack.c.l.b16 %v69
    %v148 = vpack.c.b16 %v117, %v116
    %v149 = vpack.c.b16 %v119, %v118
    %v150 = vpack.c.b16 %v121, %v120
    %v151 = vpack.c.b16 %v123, %v122
    %v152 = vpack.c.b16 %v125, %v124
    %v153 = vpack.c.b16 %v127, %v126
    %v154 = vpack.c.b16 %v129, %v128
    %v155 = vpack.c.b16 %v131, %v130
    %v156 = vpack.c.b16 %v133, %v132
    %v157 = vpack.c.b16 %v135, %v134
    %v158 = vpack.c.b16 %v137, %v136
    %v159 = vpack.c.b16 %v139, %v138
    %v160 = vpack.c.b16 %v141, %v140
    %v161 = vpack.c.b16 %v143, %v142
    %v162 = vpack.c.b16 %v145, %v144
    %v163 = vpack.c.b16 %v147, %v146
    %v172 = vunpack.c.l.b16 %v70
    %v173 = vunpack.c.h.b16 %v70
    %v174 = vunpack.c.l.b16 %v71
    %v175 = vunpack.c.h.b16 %v71
    %v176 = vunpack.c.l.b16 %v72
    %v177 = vunpack.c.h.b16 %v72
    %v178 = vunpack.c.l.b16 %v73
    %v179 = vunpack.c.h.b16 %v73
    %v180 = vunpack.c.l.b16 %v74
    %v181 = vunpack.c.h.b16 %v74
    %v182 = vunpack.c.l.b16 %v75
    %v183 = vunpack.c.h.b16 %v75
    %v184 = vunpack.c.l.b16 %v76
    %v185 = vunpack.c.h.b16 %v76
    %v186 = vunpack.c.l.b16 %v77
    %v187 = vunpack.c.h.b16 %v77
    %v188 = vpack.c.b16 %v174, %v172
    %v189 = vpack.c.b16 %v175, %v173
    %v190 = vpack.c.b16 %v178, %v176
    %v191 = vpack.c.b16 %v179, %v177
    %v192 = vpack.c.b16 %v182, %v180
    %v193 = vpack.c.b16 %v183, %v181
    %v194 = vpack.c.b16 %v186, %v184
    %v195 = vpack.c.b16 %v187, %v185
    %vm204 = vcmask 523264
    %v206 = vsel %vm204, %v148, 0
    %v209 = vsel %vm204, %v149, 0
    %v212 = vsel %vm204, %v150, 0
    %v215 = vsel %vm204, %v151, 0
    %v218 = vsel %vm204, %v152, 0
    %v221 = vsel %vm204, %v153, 0
    %v224 = vsel %vm204, %v154, 0
    %v227 = vsel %vm204, %v155, 0
    %v230 = vsel %vm204, %v156, 0
    %v233 = vsel %vm204, %v157, 0
    %v236 = vsel %vm204, %v158, 0
    %v239 = vsel %vm204, %v159, 0
    %v242 = vsel %vm204, %v160, 0
    %v245 = vsel %vm204, %v161, 0
    %v248 = vsel %vm204, %v162, 0
    %v251 = vsel %vm204, %v163, 0
    %253 = vmatpush.bf16.msra.mxu0 0
    %254 = vmatpush.bf16.msra.mxu0 0
    %255 = vmatpush.bf16.msra.mxu0 0
    %256 = vmatpush.bf16.msra.mxu0 0
    %257 = vmatpush.bf16.msra.mxu0 %v194
    %258 = vmatpush.bf16.msra.mxu0 %v192
    %259 = vmatpush.bf16.msra.mxu0 %v190
    %260 = vmatpush.bf16.msra.mxu0 %v188
    %261 = vmatmul.bf16.gmra.mxu0 %v206
    %v262 = vpop.f32.mrf.mxu0
    %v263 = vadd.f32 %v80, %v262
    %v264 = vpop.f32.mrf.mxu0
    %v265 = vadd.f32 %v80, %v264
    %266 = vmatmul.bf16.gmra.mxu0 %v209
    %v267 = vpop.f32.mrf.mxu0
    %v268 = vadd.f32 %v80, %v267
    %v269 = vpop.f32.mrf.mxu0
    %v270 = vadd.f32 %v80, %v269
    %271 = vmatmul.bf16.gmra.mxu0 %v212
    %v272 = vpop.f32.mrf.mxu0
    %v273 = vadd.f32 %v80, %v272
    %v274 = vpop.f32.mrf.mxu0
    %v275 = vadd.f32 %v80, %v274
    %276 = vmatmul.bf16.gmra.mxu0 %v215
    %v277 = vpop.f32.mrf.mxu0
    %v278 = vadd.f32 %v80, %v277
    %v279 = vpop.f32.mrf.mxu0
    %v280 = vadd.f32 %v80, %v279
    %281 = vmatmul.bf16.gmra.mxu0 %v218
    %v282 = vpop.f32.mrf.mxu0
    %v283 = vadd.f32 %v80, %v282
    %v284 = vpop.f32.mrf.mxu0
    %v285 = vadd.f32 %v80, %v284
    %286 = vmatmul.bf16.gmra.mxu0 %v221
    %v287 = vpop.f32.mrf.mxu0
    %v288 = vadd.f32 %v80, %v287
    %v289 = vpop.f32.mrf.mxu0
    %v290 = vadd.f32 %v80, %v289
    %291 = vmatmul.bf16.gmra.mxu0 %v224
    %v292 = vpop.f32.mrf.mxu0
    %v293 = vadd.f32 %v80, %v292
    %v294 = vpop.f32.mrf.mxu0
    %v295 = vadd.f32 %v80, %v294
    %296 = vmatmul.bf16.gmra.mxu0 %v227
    %v297 = vpop.f32.mrf.mxu0
    %v298 = vadd.f32 %v80, %v297
    %v299 = vpop.f32.mrf.mxu0
    %v300 = vadd.f32 %v80, %v299
    %301 = vmatmul.bf16.gmra.mxu0 %v230
    %v302 = vpop.f32.mrf.mxu0
    %v303 = vadd.f32 %v80, %v302
    %v304 = vpop.f32.mrf.mxu0
    %v305 = vadd.f32 %v80, %v304
    %306 = vmatmul.bf16.gmra.mxu0 %v233
    %v307 = vpop.f32.mrf.mxu0
    %v308 = vadd.f32 %v80, %v307
    %v309 = vpop.f32.mrf.mxu0
    %v310 = vadd.f32 %v80, %v309
    %311 = vmatmul.bf16.gmra.mxu0 %v236
    %v312 = vpop.f32.mrf.mxu0
    %v313 = vadd.f32 %v80, %v312
    %v314 = vpop.f32.mrf.mxu0
    %v315 = vadd.f32 %v80, %v314
    %316 = vmatmul.bf16.gmra.mxu0 %v239
    %v317 = vpop.f32.mrf.mxu0
    %v318 = vadd.f32 %v80, %v317
    %v319 = vpop.f32.mrf.mxu0
    %v320 = vadd.f32 %v80, %v319
    %321 = vmatmul.bf16.gmra.mxu0 %v242
    %v322 = vpop.f32.mrf.mxu0
    %v323 = vadd.f32 %v80, %v322
    %v324 = vpop.f32.mrf.mxu0
    %v325 = vadd.f32 %v80, %v324
    %326 = vmatmul.bf16.gmra.mxu0 %v245
    %v327 = vpop.f32.mrf.mxu0
    %v328 = vadd.f32 %v80, %v327
    %v329 = vpop.f32.mrf.mxu0
    %v330 = vadd.f32 %v80, %v329
    %331 = vmatmul.bf16.gmra.mxu0 %v248
    %v332 = vpop.f32.mrf.mxu0
    %v333 = vadd.f32 %v80, %v332
    %v334 = vpop.f32.mrf.mxu0
    %v335 = vadd.f32 %v80, %v334
    %336 = vmatmul.bf16.gmra.mxu0 %v251
    %v337 = vpop.f32.mrf.mxu0
    %v338 = vadd.f32 %v80, %v337
    %v339 = vpop.f32.mrf.mxu0
    %v340 = vadd.f32 %v80, %v339
    %341 = vdwg.mxu0
    %342 = vmatpush.bf16.msra.mxu0 0
    %343 = vmatpush.bf16.msra.mxu0 0
    %344 = vmatpush.bf16.msra.mxu0 0
    %345 = vmatpush.bf16.msra.mxu0 0
    %346 = vmatpush.bf16.msra.mxu0 %v195
    %347 = vmatpush.bf16.msra.mxu0 %v193
    %348 = vmatpush.bf16.msra.mxu0 %v191
    %349 = vmatpush.bf16.msra.mxu0 %v189
    %350 = vmatmul.bf16.gmra.mxu0 %v206
    %v351 = vpop.f32.mrf.mxu0
    %v352 = vadd.f32 %v81, %v351
    %v353 = vpop.f32.mrf.mxu0
    %v354 = vadd.f32 %v81, %v353
    %355 = vmatmul.bf16.gmra.mxu0 %v209
    %v356 = vpop.f32.mrf.mxu0
    %v357 = vadd.f32 %v81, %v356
    %v358 = vpop.f32.mrf.mxu0
    %v359 = vadd.f32 %v81, %v358
    %360 = vmatmul.bf16.gmra.mxu0 %v212
    %v361 = vpop.f32.mrf.mxu0
    %v362 = vadd.f32 %v81, %v361
    %v363 = vpop.f32.mrf.mxu0
    %v364 = vadd.f32 %v81, %v363
    %365 = vmatmul.bf16.gmra.mxu0 %v215
    %v366 = vpop.f32.mrf.mxu0
    %v367 = vadd.f32 %v81, %v366
    %v368 = vpop.f32.mrf.mxu0
    %v369 = vadd.f32 %v81, %v368
    %370 = vmatmul.bf16.gmra.mxu0 %v218
    %v371 = vpop.f32.mrf.mxu0
    %v372 = vadd.f32 %v81, %v371
    %v373 = vpop.f32.mrf.mxu0
    %v374 = vadd.f32 %v81, %v373
    %375 = vmatmul.bf16.gmra.mxu0 %v221
    %v376 = vpop.f32.mrf.mxu0
    %v377 = vadd.f32 %v81, %v376
    %v378 = vpop.f32.mrf.mxu0
    %v379 = vadd.f32 %v81, %v378
    %380 = vmatmul.bf16.gmra.mxu0 %v224
    %v381 = vpop.f32.mrf.mxu0
    %v382 = vadd.f32 %v81, %v381
    %v383 = vpop.f32.mrf.mxu0
    %v384 = vadd.f32 %v81, %v383
    %385 = vmatmul.bf16.gmra.mxu0 %v227
    %v386 = vpop.f32.mrf.mxu0
    %v387 = vadd.f32 %v81, %v386
    %v388 = vpop.f32.mrf.mxu0
    %v389 = vadd.f32 %v81, %v388
    %390 = vmatmul.bf16.gmra.mxu0 %v230
    %v391 = vpop.f32.mrf.mxu0
    %v392 = vadd.f32 %v81, %v391
    %v393 = vpop.f32.mrf.mxu0
    %v394 = vadd.f32 %v81, %v393
    %395 = vmatmul.bf16.gmra.mxu0 %v233
    %v396 = vpop.f32.mrf.mxu0
    %v397 = vadd.f32 %v81, %v396
    %v398 = vpop.f32.mrf.mxu0
    %v399 = vadd.f32 %v81, %v398
    %400 = vmatmul.bf16.gmra.mxu0 %v236
    %v401 = vpop.f32.mrf.mxu0
    %v402 = vadd.f32 %v81, %v401
    %v403 = vpop.f32.mrf.mxu0
    %v404 = vadd.f32 %v81, %v403
    %405 = vmatmul.bf16.gmra.mxu0 %v239
    %v406 = vpop.f32.mrf.mxu0
    %v407 = vadd.f32 %v81, %v406
    %v408 = vpop.f32.mrf.mxu0
    %v409 = vadd.f32 %v81, %v408
    %410 = vmatmul.bf16.gmra.mxu0 %v242
    %v411 = vpop.f32.mrf.mxu0
    %v412 = vadd.f32 %v81, %v411
    %v413 = vpop.f32.mrf.mxu0
    %v414 = vadd.f32 %v81, %v413
    %415 = vmatmul.bf16.gmra.mxu0 %v245
    %v416 = vpop.f32.mrf.mxu0
    %v417 = vadd.f32 %v81, %v416
    %v418 = vpop.f32.mrf.mxu0
    %v419 = vadd.f32 %v81, %v418
    %420 = vmatmul.bf16.gmra.mxu0 %v248
    %v421 = vpop.f32.mrf.mxu0
    %v422 = vadd.f32 %v81, %v421
    %v423 = vpop.f32.mrf.mxu0
    %v424 = vadd.f32 %v81, %v423
    %425 = vmatmul.bf16.gmra.mxu0 %v251
    %v426 = vpop.f32.mrf.mxu0
    %v427 = vadd.f32 %v81, %v426
    %v428 = vpop.f32.mrf.mxu0
    %v429 = vadd.f32 %v81, %v428
    %430 = vdwg.mxu0
    %v431 = vmul.f32 %v263, 0.1
    %v432 = vmul.f32 %v352, 0.1
    %v433 = vmul.f32 %v265, 0.1
    %v434 = vmul.f32 %v354, 0.1
    %v435 = vmul.f32 %v268, 0.1
    %v436 = vmul.f32 %v357, 0.1
    %v437 = vmul.f32 %v270, 0.1
    %v438 = vmul.f32 %v359, 0.1
    %v439 = vmul.f32 %v273, 0.1
    %v440 = vmul.f32 %v362, 0.1
    %v441 = vmul.f32 %v275, 0.1
    %v442 = vmul.f32 %v364, 0.1
    %v443 = vmul.f32 %v278, 0.1
    %v444 = vmul.f32 %v367, 0.1
    %v445 = vmul.f32 %v280, 0.1
    %v446 = vmul.f32 %v369, 0.1
    %v447 = vmul.f32 %v283, 0.1
    %v448 = vmul.f32 %v372, 0.1
    %v449 = vmul.f32 %v285, 0.1
    %v450 = vmul.f32 %v374, 0.1
    %v451 = vmul.f32 %v288, 0.1
    %v452 = vmul.f32 %v377, 0.1
    %v453 = vmul.f32 %v290, 0.1
    %v454 = vmul.f32 %v379, 0.1
    %v455 = vmul.f32 %v293, 0.1
    %v456 = vmul.f32 %v382, 0.1
    %v457 = vmul.f32 %v295, 0.1
    %v458 = vmul.f32 %v384, 0.1
    %v459 = vmul.f32 %v298, 0.1
    %v460 = vmul.f32 %v387, 0.1
    %v461 = vmul.f32 %v300, 0.1
    %v462 = vmul.f32 %v389, 0.1
    %v463 = vmul.f32 %v303, 0.1
    %v464 = vmul.f32 %v392, 0.1
    %v465 = vmul.f32 %v305, 0.1
    %v466 = vmul.f32 %v394, 0.1
    %v467 = vmul.f32 %v308, 0.1
    %v468 = vmul.f32 %v397, 0.1
    %v469 = vmul.f32 %v310, 0.1
    %v470 = vmul.f32 %v399, 0.1
    %v471 = vmul.f32 %v313, 0.1
    %v472 = vmul.f32 %v402, 0.1
    %v473 = vmul.f32 %v315, 0.1
    %v474 = vmul.f32 %v404, 0.1
    %v475 = vmul.f32 %v318, 0.1
    %v476 = vmul.f32 %v407, 0.1
    %v477 = vmul.f32 %v320, 0.1
    %v478 = vmul.f32 %v409, 0.1
    %v479 = vmul.f32 %v323, 0.1
    %v480 = vmul.f32 %v412, 0.1
    %v481 = vmul.f32 %v325, 0.1
    %v482 = vmul.f32 %v414, 0.1
    %v483 = vmul.f32 %v328, 0.1
    %v484 = vmul.f32 %v417, 0.1
    %v485 = vmul.f32 %v330, 0.1
    %v486 = vmul.f32 %v419, 0.1
    %v487 = vmul.f32 %v333, 0.1
    %v488 = vmul.f32 %v422, 0.1
    %v489 = vmul.f32 %v335, 0.1
    %v490 = vmul.f32 %v424, 0.1
    %v491 = vmul.f32 %v338, 0.1
    %v492 = vmul.f32 %v427, 0.1
    %v493 = vmul.f32 %v340, 0.1
    %v494 = vmul.f32 %v429, 0.1
    %v495 = vmax.f32 %v263, %v431
    %v496 = vmax.f32 %v352, %v432
    %v497 = vmax.f32 %v265, %v433
    %v498 = vmax.f32 %v354, %v434
    %v499 = vmax.f32 %v268, %v435
    %v500 = vmax.f32 %v357, %v436
    %v501 = vmax.f32 %v270, %v437
    %v502 = vmax.f32 %v359, %v438
    %v503 = vmax.f32 %v273, %v439
    %v504 = vmax.f32 %v362, %v440
    %v505 = vmax.f32 %v275, %v441
    %v506 = vmax.f32 %v364, %v442
    %v507 = vmax.f32 %v278, %v443
    %v508 = vmax.f32 %v367, %v444
    %v509 = vmax.f32 %v280, %v445
    %v510 = vmax.f32 %v369, %v446
    %v511 = vmax.f32 %v283, %v447
    %v512 = vmax.f32 %v372, %v448
    %v513 = vmax.f32 %v285, %v449
    %v514 = vmax.f32 %v374, %v450
    %v515 = vmax.f32 %v288, %v451
    %v516 = vmax.f32 %v377, %v452
    %v517 = vmax.f32 %v290, %v453
    %v518 = vmax.f32 %v379, %v454
    %v519 = vmax.f32 %v293, %v455
    %v520 = vmax.f32 %v382, %v456
    %v521 = vmax.f32 %v295, %v457
    %v522 = vmax.f32 %v384, %v458
    %v523 = vmax.f32 %v298, %v459
    %v524 = vmax.f32 %v387, %v460
    %v525 = vmax.f32 %v300, %v461
    %v526 = vmax.f32 %v389, %v462
    %v527 = vmax.f32 %v303, %v463
    %v528 = vmax.f32 %v392, %v464
    %v529 = vmax.f32 %v305, %v465
    %v530 = vmax.f32 %v394, %v466
    %v531 = vmax.f32 %v308, %v467
    %v532 = vmax.f32 %v397, %v468
    %v533 = vmax.f32 %v310, %v469
    %v534 = vmax.f32 %v399, %v470
    %v535 = vmax.f32 %v313, %v471
    %v536 = vmax.f32 %v402, %v472
    %v537 = vmax.f32 %v315, %v473
    %v538 = vmax.f32 %v404, %v474
    %v539 = vmax.f32 %v318, %v475
    %v540 = vmax.f32 %v407, %v476
    %v541 = vmax.f32 %v320, %v477
    %v542 = vmax.f32 %v409, %v478
    %v543 = vmax.f32 %v323, %v479
    %v544 = vmax.f32 %v412, %v480
    %v545 = vmax.f32 %v325, %v481
    %v546 = vmax.f32 %v414, %v482
    %v547 = vmax.f32 %v328, %v483
    %v548 = vmax.f32 %v417, %v484
    %v549 = vmax.f32 %v330, %v485
    %v550 = vmax.f32 %v419, %v486
    %v551 = vmax.f32 %v333, %v487
    %v552 = vmax.f32 %v422, %v488
    %v553 = vmax.f32 %v335, %v489
    %v554 = vmax.f32 %v424, %v490
    %v555 = vmax.f32 %v338, %v491
    %v556 = vmax.f32 %v427, %v492
    %v557 = vmax.f32 %v340, %v493
    %v558 = vmax.f32 %v429, %v494
    %v559 = vpack.c.bf16 %v497, %v495
    %v560 = vpack.c.bf16 %v498, %v496
    %v561 = vpack.c.bf16 %v501, %v499
    %v562 = vpack.c.bf16 %v502, %v500
    %v563 = vpack.c.bf16 %v505, %v503
    %v564 = vpack.c.bf16 %v506, %v504
    %v565 = vpack.c.bf16 %v509, %v507
    %v566 = vpack.c.bf16 %v510, %v508
    %v567 = vpack.c.bf16 %v513, %v511
    %v568 = vpack.c.bf16 %v514, %v512
    %v569 = vpack.c.bf16 %v517, %v515
    %v570 = vpack.c.bf16 %v518, %v516
    %v571 = vpack.c.bf16 %v521, %v519
    %v572 = vpack.c.bf16 %v522, %v520
    %v573 = vpack.c.bf16 %v525, %v523
    %v574 = vpack.c.bf16 %v526, %v524
    %v575 = vpack.c.bf16 %v529, %v527
    %v576 = vpack.c.bf16 %v530, %v528
    %v577 = vpack.c.bf16 %v533, %v531
    %v578 = vpack.c.bf16 %v534, %v532
    %v579 = vpack.c.bf16 %v537, %v535
    %v580 = vpack.c.bf16 %v538, %v536
    %v581 = vpack.c.bf16 %v541, %v539
    %v582 = vpack.c.bf16 %v542, %v540
    %v583 = vpack.c.bf16 %v545, %v543
    %v584 = vpack.c.bf16 %v546, %v544
    %v585 = vpack.c.bf16 %v549, %v547
    %v586 = vpack.c.bf16 %v550, %v548
    %v587 = vpack.c.bf16 %v553, %v551
    %v588 = vpack.c.bf16 %v554, %v552
    %v589 = vpack.c.bf16 %v557, %v555
    %v590 = vpack.c.bf16 %v558, %v556
    %v591 = vld [vmem:[#allocation2] sm:$0xff]
    %v592 = vld [vmem:[#allocation2 + $0x8] sm:$0xff]
    %v593 = vld [vmem:[#allocation2 + $0x10] sm:$0xff]
    %v594 = vld [vmem:[#allocation2 + $0x18] sm:$0xf]
    %v595 = vld [vmem:[#allocation2 + $0x1c] sm:$0xff]
    %v596 = vld [vmem:[#allocation2 + $0x24] sm:$0xff]
    %v597 = vld [vmem:[#allocation2 + $0x2c] sm:$0xff]
    %v598 = vld [vmem:[#allocation2 + $0x34] sm:$0xf]
    %v599 = vld [vmem:[#allocation2 + $0x38] sm:$0xff]
    %v600 = vld [vmem:[#allocation2 + $0x40] sm:$0xff]
    %v601 = vld [vmem:[#allocation2 + $0x48] sm:$0xff]
    %v602 = vld [vmem:[#allocation2 + $0x50] sm:$0xf]
    %v603 = vld [vmem:[#allocation2 + $0x54] sm:$0xff]
    %v604 = vld [vmem:[#allocation2 + $0x5c] sm:$0xff]
    %v605 = vld [vmem:[#allocation2 + $0x64] sm:$0xff]
    %v606 = vld [vmem:[#allocation2 + $0x6c] sm:$0xf]
    %v607 = vld [vmem:[#allocation2 + $0x70] sm:$0xff]
    %v608 = vld [vmem:[#allocation2 + $0x78] sm:$0xff]
    %v609 = vld [vmem:[#allocation2 + $0x80] sm:$0xff]
    %v610 = vld [vmem:[#allocation2 + $0x88] sm:$0xf]
    %v611 = vld [vmem:[#allocation2 + $0x8c] sm:$0xff]
    %v612 = vld [vmem:[#allocation2 + $0x94] sm:$0xff]
    %v613 = vld [vmem:[#allocation2 + $0x9c] sm:$0xff]
    %v614 = vld [vmem:[#allocation2 + $0xa4] sm:$0xf]
    %v615 = vld [vmem:[#allocation2 + $0xa8] sm:$0xff]
    %v616 = vld [vmem:[#allocation2 + $0xb0] sm:$0xff]
    %v617 = vld [vmem:[#allocation2 + $0xb8] sm:$0xff]
    %v618 = vld [vmem:[#allocation2 + $0xc0] sm:$0xf]
    %v619 = vld [vmem:[#allocation2 + $0xc4] sm:$0xff]
    %v620 = vld [vmem:[#allocation2 + $0xcc] sm:$0xff]
    %v621 = vld [vmem:[#allocation2 + $0xd4] sm:$0xff]
    %v622 = vld [vmem:[#allocation2 + $0xdc] sm:$0xf]
    %v623 = vld [vmem:[#allocation2 + $0xe0] sm:$0xff]
    %v624 = vld [vmem:[#allocation2 + $0xe8] sm:$0xff]
    %v625 = vld [vmem:[#allocation2 + $0xf0] sm:$0xff]
    %v626 = vld [vmem:[#allocation2 + $0xf8] sm:$0xf]
    %v627 = vld [vmem:[#allocation2 + $0xfc] sm:$0xff]
    %v628 = vld [vmem:[#allocation2 + $0x104] sm:$0xff]
    %v629 = vld [vmem:[#allocation2 + $0x10c] sm:$0xff]
    %v630 = vld [vmem:[#allocation2 + $0x114] sm:$0xf]
    %v631 = vld [vmem:[#allocation2 + $0x118] sm:$0xff]
    %v632 = vld [vmem:[#allocation2 + $0x120] sm:$0xff]
    %v633 = vld [vmem:[#allocation2 + $0x128] sm:$0xff]
    %v634 = vld [vmem:[#allocation2 + $0x130] sm:$0xf]
    %v635 = vld [vmem:[#allocation2 + $0x134] sm:$0xff]
    %v636 = vld [vmem:[#allocation2 + $0x13c] sm:$0xff]
    %v637 = vld [vmem:[#allocation2 + $0x144] sm:$0xff]
    %v638 = vld [vmem:[#allocation2 + $0x14c] sm:$0xf]
    %v639 = vld [vmem:[#allocation2 + $0x150] sm:$0xff]
    %v640 = vld [vmem:[#allocation2 + $0x158] sm:$0xff]
    %v641 = vld [vmem:[#allocation2 + $0x160] sm:$0xff]
    %v642 = vld [vmem:[#allocation2 + $0x168] sm:$0xf]
    %v643 = vld [vmem:[#allocation2 + $0x16c] sm:$0xff]
    %v644 = vld [vmem:[#allocation2 + $0x174] sm:$0xff]
    %v645 = vld [vmem:[#allocation2 + $0x17c] sm:$0xff]
    %v646 = vld [vmem:[#allocation2 + $0x184] sm:$0xf]
    %v647 = vld [vmem:[#allocation2 + $0x188] sm:$0xff]
    %v648 = vld [vmem:[#allocation2 + $0x190] sm:$0xff]
    %v649 = vld [vmem:[#allocation2 + $0x198] sm:$0xff]
    %v650 = vld [vmem:[#allocation2 + $0x1a0] sm:$0xf]
    %v651 = vld [vmem:[#allocation2 + $0x1a4] sm:$0xff]
    %v652 = vld [vmem:[#allocation2 + $0x1ac] sm:$0xff]
    %v653 = vld [vmem:[#allocation2 + $0x1b4] sm:$0xff]
    %v654 = vld [vmem:[#allocation2 + $0x1bc] sm:$0xf]
    %v655 = vld [vmem:[#allocation2 + $0x1c0] sm:$0xff]
    %v656 = vld [vmem:[#allocation2 + $0x1c8] sm:$0xff]
    %v657 = vld [vmem:[#allocation2 + $0x1d0] sm:$0xff]
    %v658 = vld [vmem:[#allocation2 + $0x1d8] sm:$0xf]
    %v659 = vld [vmem:[#allocation2 + $0x1dc] sm:$0xff]
    %v660 = vld [vmem:[#allocation2 + $0x1e4] sm:$0xff]
    %v661 = vld [vmem:[#allocation2 + $0x1ec] sm:$0xff]
    %v662 = vld [vmem:[#allocation2 + $0x1f4] sm:$0xf]
    %v663 = vld [vmem:[#allocation2 + $0x1f8] sm:$0xff]
    %v664 = vld [vmem:[#allocation2 + $0x200] sm:$0xff]
    %v665 = vld [vmem:[#allocation2 + $0x208] sm:$0xff]
    %v666 = vld [vmem:[#allocation2 + $0x210] sm:$0xf]
    %v667 = vld [vmem:[#allocation2 + $0x214] sm:$0xff]
    %v668 = vld [vmem:[#allocation2 + $0x21c] sm:$0xff]
    %v669 = vld [vmem:[#allocation2 + $0x224] sm:$0xff]
    %v670 = vld [vmem:[#allocation2 + $0x22c] sm:$0xf]
    %v671 = vld [vmem:[#allocation2 + $0x230] sm:$0xff]
    %v672 = vld [vmem:[#allocation2 + $0x238] sm:$0xff]
    %v673 = vld [vmem:[#allocation2 + $0x240] sm:$0xff]
    %v674 = vld [vmem:[#allocation2 + $0x248] sm:$0xf]
    %v675 = vld [vmem:[#allocation2 + $0x24c] sm:$0xff]
    %v676 = vld [vmem:[#allocation2 + $0x254] sm:$0xff]
    %v677 = vld [vmem:[#allocation2 + $0x25c] sm:$0xff]
    %v678 = vld [vmem:[#allocation2 + $0x264] sm:$0xf]
    %v679 = vld [vmem:[#allocation2 + $0x268] sm:$0xff]
    %v680 = vld [vmem:[#allocation2 + $0x270] sm:$0xff]
    %v681 = vld [vmem:[#allocation2 + $0x278] sm:$0xff]
    %v682 = vld [vmem:[#allocation2 + $0x280] sm:$0xf]
    %v683 = vld [vmem:[#allocation2 + $0x284] sm:$0xff]
    %v684 = vld [vmem:[#allocation2 + $0x28c] sm:$0xff]
    %v685 = vld [vmem:[#allocation2 + $0x294] sm:$0xff]
    %v686 = vld [vmem:[#allocation2 + $0x29c] sm:$0xf]
    %v687 = vld [vmem:[#allocation2 + $0x2a0] sm:$0xff]
    %v688 = vld [vmem:[#allocation2 + $0x2a8] sm:$0xff]
    %v689 = vld [vmem:[#allocation2 + $0x2b0] sm:$0xff]
    %v690 = vld [vmem:[#allocation2 + $0x2b8] sm:$0xf]
    %v691 = vld [vmem:[#allocation2 + $0x2bc] sm:$0xff]
    %v692 = vld [vmem:[#allocation2 + $0x2c4] sm:$0xff]
    %v693 = vld [vmem:[#allocation2 + $0x2cc] sm:$0xff]
    %v694 = vld [vmem:[#allocation2 + $0x2d4] sm:$0xf]
    %v695 = vld [vmem:[#allocation2 + $0x2d8] sm:$0xff]
    %v696 = vld [vmem:[#allocation2 + $0x2e0] sm:$0xff]
    %v697 = vld [vmem:[#allocation2 + $0x2e8] sm:$0xff]
    %v698 = vld [vmem:[#allocation2 + $0x2f0] sm:$0xf]
    %v699 = vld [vmem:[#allocation2 + $0x2f4] sm:$0xff]
    %v700 = vld [vmem:[#allocation2 + $0x2fc] sm:$0xff]
    %v701 = vld [vmem:[#allocation2 + $0x304] sm:$0xff]
    %v702 = vld [vmem:[#allocation2 + $0x30c] sm:$0xf]
    %v703 = vld [vmem:[#allocation2 + $0x310] sm:$0xff]
    %v704 = vld [vmem:[#allocation2 + $0x318] sm:$0xff]
    %v705 = vld [vmem:[#allocation2 + $0x320] sm:$0xff]
    %v706 = vld [vmem:[#allocation2 + $0x328] sm:$0xf]
    %v707 = vld [vmem:[#allocation2 + $0x32c] sm:$0xff]
    %v708 = vld [vmem:[#allocation2 + $0x334] sm:$0xff]
    %v709 = vld [vmem:[#allocation2 + $0x33c] sm:$0xff]
    %v710 = vld [vmem:[#allocation2 + $0x344] sm:$0xf]
    %v711 = vld [vmem:[#allocation2 + $0x348] sm:$0xff]
    %v712 = vld [vmem:[#allocation2 + $0x350] sm:$0xff]
    %v713 = vld [vmem:[#allocation2 + $0x358] sm:$0xff]
    %v714 = vld [vmem:[#allocation2 + $0x360] sm:$0xf]
    %v715 = vld [vmem:[#allocation2 + $0x364] sm:$0xff]
    %v716 = vld [vmem:[#allocation2 + $0x36c] sm:$0xff]
    %v717 = vld [vmem:[#allocation2 + $0x374] sm:$0xff]
    %v718 = vld [vmem:[#allocation2 + $0x37c] sm:$0xf]
    %v719 = vld [vmem:[%s4] sm:$0xff]
    %v721 = vperm.slane %v719, 0
    %v722 = vperm.slane %v719, 1
    %v723 = vperm.slane %v719, 2
    %v724 = vperm.slane %v719, 3
    %v725 = vperm.slane %v719, 4
    %v726 = vperm.slane %v719, 5
    %v727 = vperm.slane %v719, 6
    %v863 = vunpack.c.l.b16 %v591
    %v864 = vunpack.c.h.b16 %v591
    %v865 = vunpack.c.l.b16 %v592
    %v866 = vunpack.c.h.b16 %v592
    %v867 = vunpack.c.l.b16 %v593
    %v868 = vunpack.c.h.b16 %v593
    %v869 = vunpack.c.l.b16 %v594
    %v870 = vunpack.c.l.b16 %v595
    %v871 = vunpack.c.h.b16 %v595
    %v872 = vunpack.c.l.b16 %v596
    %v873 = vunpack.c.h.b16 %v596
    %v874 = vunpack.c.l.b16 %v597
    %v875 = vunpack.c.h.b16 %v597
    %v876 = vunpack.c.l.b16 %v598
    %v877 = vunpack.c.l.b16 %v599
    %v878 = vunpack.c.h.b16 %v599
    %v879 = vunpack.c.l.b16 %v600
    %v880 = vunpack.c.h.b16 %v600
    %v881 = vunpack.c.l.b16 %v601
    %v882 = vunpack.c.h.b16 %v601
    %v883 = vunpack.c.l.b16 %v602
    %v884 = vunpack.c.l.b16 %v603
    %v885 = vunpack.c.h.b16 %v603
    %v886 = vunpack.c.l.b16 %v604
    %v887 = vunpack.c.h.b16 %v604
    %v888 = vunpack.c.l.b16 %v605
    %v889 = vunpack.c.h.b16 %v605
    %v890 = vunpack.c.l.b16 %v606
    %v891 = vunpack.c.l.b16 %v607
    %v892 = vunpack.c.h.b16 %v607
    %v893 = vunpack.c.l.b16 %v608
    %v894 = vunpack.c.h.b16 %v608
    %v895 = vunpack.c.l.b16 %v609
    %v896 = vunpack.c.h.b16 %v609
    %v897 = vunpack.c.l.b16 %v610
    %v898 = vunpack.c.l.b16 %v611
    %v899 = vunpack.c.h.b16 %v611
    %v900 = vunpack.c.l.b16 %v612
    %v901 = vunpack.c.h.b16 %v612
    %v902 = vunpack.c.l.b16 %v613
    %v903 = vunpack.c.h.b16 %v613
    %v904 = vunpack.c.l.b16 %v614
    %v905 = vunpack.c.l.b16 %v615
    %v906 = vunpack.c.h.b16 %v615
    %v907 = vunpack.c.l.b16 %v616
    %v908 = vunpack.c.h.b16 %v616
    %v909 = vunpack.c.l.b16 %v617
    %v910 = vunpack.c.h.b16 %v617
    %v911 = vunpack.c.l.b16 %v618
    %v912 = vunpack.c.l.b16 %v619
    %v913 = vunpack.c.h.b16 %v619
    %v914 = vunpack.c.l.b16 %v620
    %v915 = vunpack.c.h.b16 %v620
    %v916 = vunpack.c.l.b16 %v621
    %v917 = vunpack.c.h.b16 %v621
    %v918 = vunpack.c.l.b16 %v622
    %v919 = vunpack.c.l.b16 %v623
    %v920 = vunpack.c.h.b16 %v623
    %v921 = vunpack.c.l.b16 %v624
    %v922 = vunpack.c.h.b16 %v624
    %v923 = vunpack.c.l.b16 %v625
    %v924 = vunpack.c.h.b16 %v625
    %v925 = vunpack.c.l.b16 %v626
    %v926 = vunpack.c.l.b16 %v627
    %v927 = vunpack.c.h.b16 %v627
    %v928 = vunpack.c.l.b16 %v628
    %v929 = vunpack.c.h.b16 %v628
    %v930 = vunpack.c.l.b16 %v629
    %v931 = vunpack.c.h.b16 %v629
    %v932 = vunpack.c.l.b16 %v630
    %v933 = vunpack.c.l.b16 %v631
    %v934 = vunpack.c.h.b16 %v631
    %v935 = vunpack.c.l.b16 %v632
    %v936 = vunpack.c.h.b16 %v632
    %v937 = vunpack.c.l.b16 %v633
    %v938 = vunpack.c.h.b16 %v633
    %v939 = vunpack.c.l.b16 %v634
    %v940 = vunpack.c.l.b16 %v635
    %v941 = vunpack.c.h.b16 %v635
    %v942 = vunpack.c.l.b16 %v636
    %v943 = vunpack.c.h.b16 %v636
    %v944 = vunpack.c.l.b16 %v637
    %v945 = vunpack.c.h.b16 %v637
    %v946 = vunpack.c.l.b16 %v638
    %v947 = vunpack.c.l.b16 %v639
    %v948 = vunpack.c.h.b16 %v639
    %v949 = vunpack.c.l.b16 %v640
    %v950 = vunpack.c.h.b16 %v640
    %v951 = vunpack.c.l.b16 %v641
    %v952 = vunpack.c.h.b16 %v641
    %v953 = vunpack.c.l.b16 %v642
    %v954 = vunpack.c.l.b16 %v643
    %v955 = vunpack.c.h.b16 %v643
    %v956 = vunpack.c.l.b16 %v644
    %v957 = vunpack.c.h.b16 %v644
    %v958 = vunpack.c.l.b16 %v645
    %v959 = vunpack.c.h.b16 %v645
    %v960 = vunpack.c.l.b16 %v646
    %v961 = vunpack.c.l.b16 %v647
    %v962 = vunpack.c.h.b16 %v647
    %v963 = vunpack.c.l.b16 %v648
    %v964 = vunpack.c.h.b16 %v648
    %v965 = vunpack.c.l.b16 %v649
    %v966 = vunpack.c.h.b16 %v649
    %v967 = vunpack.c.l.b16 %v650
    %v968 = vunpack.c.l.b16 %v651
    %v969 = vunpack.c.h.b16 %v651
    %v970 = vunpack.c.l.b16 %v652
    %v971 = vunpack.c.h.b16 %v652
    %v972 = vunpack.c.l.b16 %v653
    %v973 = vunpack.c.h.b16 %v653
    %v974 = vunpack.c.l.b16 %v654
    %v975 = vunpack.c.l.b16 %v655
    %v976 = vunpack.c.h.b16 %v655
    %v977 = vunpack.c.l.b16 %v656
    %v978 = vunpack.c.h.b16 %v656
    %v979 = vunpack.c.l.b16 %v657
    %v980 = vunpack.c.h.b16 %v657
    %v981 = vunpack.c.l.b16 %v658
    %v982 = vunpack.c.l.b16 %v659
    %v983 = vunpack.c.h.b16 %v659
    %v984 = vunpack.c.l.b16 %v660
    %v985 = vunpack.c.h.b16 %v660
    %v986 = vunpack.c.l.b16 %v661
    %v987 = vunpack.c.h.b16 %v661
    %v988 = vunpack.c.l.b16 %v662
    %v989 = vunpack.c.l.b16 %v663
    %v990 = vunpack.c.h.b16 %v663
    %v991 = vunpack.c.l.b16 %v664
    %v992 = vunpack.c.h.b16 %v664
    %v993 = vunpack.c.l.b16 %v665
    %v994 = vunpack.c.h.b16 %v665
    %v995 = vunpack.c.l.b16 %v666
    %v996 = vunpack.c.l.b16 %v667
    %v997 = vunpack.c.h.b16 %v667
    %v998 = vunpack.c.l.b16 %v668
    %v999 = vunpack.c.h.b16 %v668
    %v1000 = vunpack.c.l.b16 %v669
    %v1001 = vunpack.c.h.b16 %v669
    %v1002 = vunpack.c.l.b16 %v670
    %v1003 = vunpack.c.l.b16 %v671
    %v1004 = vunpack.c.h.b16 %v671
    %v1005 = vunpack.c.l.b16 %v672
    %v1006 = vunpack.c.h.b16 %v672
    %v1007 = vunpack.c.l.b16 %v673
    %v1008 = vunpack.c.h.b16 %v673
    %v1009 = vunpack.c.l.b16 %v674
    %v1010 = vunpack.c.l.b16 %v675
    %v1011 = vunpack.c.h.b16 %v675
    %v1012 = vunpack.c.l.b16 %v676
    %v1013 = vunpack.c.h.b16 %v676
    %v1014 = vunpack.c.l.b16 %v677
    %v1015 = vunpack.c.h.b16 %v677
    %v1016 = vunpack.c.l.b16 %v678
    %v1017 = vunpack.c.l.b16 %v679
    %v1018 = vunpack.c.h.b16 %v679
    %v1019 = vunpack.c.l.b16 %v680
    %v1020 = vunpack.c.h.b16 %v680
    %v1021 = vunpack.c.l.b16 %v681
    %v1022 = vunpack.c.h.b16 %v681
    %v1023 = vunpack.c.l.b16 %v682
    %v1024 = vunpack.c.l.b16 %v683
    %v1025 = vunpack.c.h.b16 %v683
    %v1026 = vunpack.c.l.b16 %v684
    %v1027 = vunpack.c.h.b16 %v684
    %v1028 = vunpack.c.l.b16 %v685
    %v1029 = vunpack.c.h.b16 %v685
    %v1030 = vunpack.c.l.b16 %v686
    %v1031 = vunpack.c.l.b16 %v687
    %v1032 = vunpack.c.h.b16 %v687
    %v1033 = vunpack.c.l.b16 %v688
    %v1034 = vunpack.c.h.b16 %v688
    %v1035 = vunpack.c.l.b16 %v689
    %v1036 = vunpack.c.h.b16 %v689
    %v1037 = vunpack.c.l.b16 %v690
    %v1038 = vunpack.c.l.b16 %v691
    %v1039 = vunpack.c.h.b16 %v691
    %v1040 = vunpack.c.l.b16 %v692
    %v1041 = vunpack.c.h.b16 %v692
    %v1042 = vunpack.c.l.b16 %v693
    %v1043 = vunpack.c.h.b16 %v693
    %v1044 = vunpack.c.l.b16 %v694
    %v1045 = vunpack.c.l.b16 %v695
    %v1046 = vunpack.c.h.b16 %v695
    %v1047 = vunpack.c.l.b16 %v696
    %v1048 = vunpack.c.h.b16 %v696
    %v1049 = vunpack.c.l.b16 %v697
    %v1050 = vunpack.c.h.b16 %v697
    %v1051 = vunpack.c.l.b16 %v698
    %v1052 = vunpack.c.l.b16 %v699
    %v1053 = vunpack.c.h.b16 %v699
    %v1054 = vunpack.c.l.b16 %v700
    %v1055 = vunpack.c.h.b16 %v700
    %v1056 = vunpack.c.l.b16 %v701
    %v1057 = vunpack.c.h.b16 %v701
    %v1058 = vunpack.c.l.b16 %v702
    %v1059 = vunpack.c.l.b16 %v703
    %v1060 = vunpack.c.h.b16 %v703
    %v1061 = vunpack.c.l.b16 %v704
    %v1062 = vunpack.c.h.b16 %v704
    %v1063 = vunpack.c.l.b16 %v705
    %v1064 = vunpack.c.h.b16 %v705
    %v1065 = vunpack.c.l.b16 %v706
    %v1066 = vunpack.c.l.b16 %v707
    %v1067 = vunpack.c.h.b16 %v707
    %v1068 = vunpack.c.l.b16 %v708
    %v1069 = vunpack.c.h.b16 %v708
    %v1070 = vunpack.c.l.b16 %v709
    %v1071 = vunpack.c.h.b16 %v709
    %v1072 = vunpack.c.l.b16 %v710
    %v1073 = vunpack.c.l.b16 %v711
    %v1074 = vunpack.c.h.b16 %v711
    %v1075 = vunpack.c.l.b16 %v712
    %v1076 = vunpack.c.h.b16 %v712
    %v1077 = vunpack.c.l.b16 %v713
    %v1078 = vunpack.c.h.b16 %v713
    %v1079 = vunpack.c.l.b16 %v714
    %v1080 = vunpack.c.l.b16 %v715
    %v1081 = vunpack.c.h.b16 %v715
    %v1082 = vunpack.c.l.b16 %v716
    %v1083 = vunpack.c.h.b16 %v716
    %v1084 = vunpack.c.l.b16 %v717
    %v1085 = vunpack.c.h.b16 %v717
    %v1086 = vunpack.c.l.b16 %v718
    %v1087 = vpack.c.b16 %v870, %v863
    %v1088 = vpack.c.b16 %v871, %v864
    %v1089 = vpack.c.b16 %v872, %v865
    %v1090 = vpack.c.b16 %v873, %v866
    %v1091 = vpack.c.b16 %v874, %v867
    %v1092 = vpack.c.b16 %v875, %v868
    %v1093 = vpack.c.b16 %v876, %v869
    %v1094 = vpack.c.b16 %v884, %v877
    %v1095 = vpack.c.b16 %v885, %v878
    %v1096 = vpack.c.b16 %v886, %v879
    %v1097 = vpack.c.b16 %v887, %v880
    %v1098 = vpack.c.b16 %v888, %v881
    %v1099 = vpack.c.b16 %v889, %v882
    %v1100 = vpack.c.b16 %v890, %v883
    %v1101 = vpack.c.b16 %v898, %v891
    %v1102 = vpack.c.b16 %v899, %v892
    %v1103 = vpack.c.b16 %v900, %v893
    %v1104 = vpack.c.b16 %v901, %v894
    %v1105 = vpack.c.b16 %v902, %v895
    %v1106 = vpack.c.b16 %v903, %v896
    %v1107 = vpack.c.b16 %v904, %v897
    %v1108 = vpack.c.b16 %v912, %v905
    %v1109 = vpack.c.b16 %v913, %v906
    %v1110 = vpack.c.b16 %v914, %v907
    %v1111 = vpack.c.b16 %v915, %v908
    %v1112 = vpack.c.b16 %v916, %v909
    %v1113 = vpack.c.b16 %v917, %v910
    %v1114 = vpack.c.b16 %v918, %v911
    %v1115 = vpack.c.b16 %v926, %v919
    %v1116 = vpack.c.b16 %v927, %v920
    %v1117 = vpack.c.b16 %v928, %v921
    %v1118 = vpack.c.b16 %v929, %v922
    %v1119 = vpack.c.b16 %v930, %v923
    %v1120 = vpack.c.b16 %v931, %v924
    %v1121 = vpack.c.b16 %v932, %v925
    %v1122 = vpack.c.b16 %v940, %v933
    %v1123 = vpack.c.b16 %v941, %v934
    %v1124 = vpack.c.b16 %v942, %v935
    %v1125 = vpack.c.b16 %v943, %v936
    %v1126 = vpack.c.b16 %v944, %v937
    %v1127 = vpack.c.b16 %v945, %v938
    %v1128 = vpack.c.b16 %v946, %v939
    %v1129 = vpack.c.b16 %v954, %v947
    %v1130 = vpack.c.b16 %v955, %v948
    %v1131 = vpack.c.b16 %v956, %v949
    %v1132 = vpack.c.b16 %v957, %v950
    %v1133 = vpack.c.b16 %v958, %v951
    %v1134 = vpack.c.b16 %v959, %v952
    %v1135 = vpack.c.b16 %v960, %v953
    %v1136 = vpack.c.b16 %v968, %v961
    %v1137 = vpack.c.b16 %v969, %v962
    %v1138 = vpack.c.b16 %v970, %v963
    %v1139 = vpack.c.b16 %v971, %v964
    %v1140 = vpack.c.b16 %v972, %v965
    %v1141 = vpack.c.b16 %v973, %v966
    %v1142 = vpack.c.b16 %v974, %v967
    %v1143 = vpack.c.b16 %v982, %v975
    %v1144 = vpack.c.b16 %v983, %v976
    %v1145 = vpack.c.b16 %v984, %v977
    %v1146 = vpack.c.b16 %v985, %v978
    %v1147 = vpack.c.b16 %v986, %v979
    %v1148 = vpack.c.b16 %v987, %v980
    %v1149 = vpack.c.b16 %v988, %v981
    %v1150 = vpack.c.b16 %v996, %v989
    %v1151 = vpack.c.b16 %v997, %v990
    %v1152 = vpack.c.b16 %v998, %v991
    %v1153 = vpack.c.b16 %v999, %v992
    %v1154 = vpack.c.b16 %v1000, %v993
    %v1155 = vpack.c.b16 %v1001, %v994
    %v1156 = vpack.c.b16 %v1002, %v995
    %v1157 = vpack.c.b16 %v1010, %v1003
    %v1158 = vpack.c.b16 %v1011, %v1004
    %v1159 = vpack.c.b16 %v1012, %v1005
    %v1160 = vpack.c.b16 %v1013, %v1006
    %v1161 = vpack.c.b16 %v1014, %v1007
    %v1162 = vpack.c.b16 %v1015, %v1008
    %v1163 = vpack.c.b16 %v1016, %v1009
    %v1164 = vpack.c.b16 %v1024, %v1017
    %v1165 = vpack.c.b16 %v1025, %v1018
    %v1166 = vpack.c.b16 %v1026, %v1019
    %v1167 = vpack.c.b16 %v1027, %v1020
    %v1168 = vpack.c.b16 %v1028, %v1021
    %v1169 = vpack.c.b16 %v1029, %v1022
    %v1170 = vpack.c.b16 %v1030, %v1023
    %v1171 = vpack.c.b16 %v1038, %v1031
    %v1172 = vpack.c.b16 %v1039, %v1032
    %v1173 = vpack.c.b16 %v1040, %v1033
    %v1174 = vpack.c.b16 %v1041, %v1034
    %v1175 = vpack.c.b16 %v1042, %v1035
    %v1176 = vpack.c.b16 %v1043, %v1036
    %v1177 = vpack.c.b16 %v1044, %v1037
    %v1178 = vpack.c.b16 %v1052, %v1045
    %v1179 = vpack.c.b16 %v1053, %v1046
    %v1180 = vpack.c.b16 %v1054, %v1047
    %v1181 = vpack.c.b16 %v1055, %v1048
    %v1182 = vpack.c.b16 %v1056, %v1049
    %v1183 = vpack.c.b16 %v1057, %v1050
    %v1184 = vpack.c.b16 %v1058, %v1051
    %v1185 = vpack.c.b16 %v1066, %v1059
    %v1186 = vpack.c.b16 %v1067, %v1060
    %v1187 = vpack.c.b16 %v1068, %v1061
    %v1188 = vpack.c.b16 %v1069, %v1062
    %v1189 = vpack.c.b16 %v1070, %v1063
    %v1190 = vpack.c.b16 %v1071, %v1064
    %v1191 = vpack.c.b16 %v1072, %v1065
    %v1192 = vpack.c.b16 %v1080, %v1073
    %v1193 = vpack.c.b16 %v1081, %v1074
    %v1194 = vpack.c.b16 %v1082, %v1075
    %v1195 = vpack.c.b16 %v1083, %v1076
    %v1196 = vpack.c.b16 %v1084, %v1077
    %v1197 = vpack.c.b16 %v1085, %v1078
    %v1198 = vpack.c.b16 %v1086, %v1079
    %1311 = vmatpush.bf16.msra.mxu0 %v1136
    %1312 = vmatpush.bf16.msra.mxu0 %v1129
    %1313 = vmatpush.bf16.msra.mxu0 %v1122
    %1314 = vmatpush.bf16.msra.mxu0 %v1115
    %1315 = vmatpush.bf16.msra.mxu0 %v1108
    %1316 = vmatpush.bf16.msra.mxu0 %v1101
    %1317 = vmatpush.bf16.msra.mxu0 %v1094
    %1318 = vmatpush.bf16.msra.mxu0 %v1087
    %1319 = vmatmul.bf16.gmra.mxu0 %v559
    %v1320 = vpop.f32.mrf.mxu0
    %v1321 = vadd.f32 %v721, %v1320
    %v1322 = vpop.f32.mrf.mxu0
    %v1323 = vadd.f32 %v721, %v1322
    %1324 = vmatmul.bf16.gmra.mxu0 %v561
    %v1325 = vpop.f32.mrf.mxu0
    %v1326 = vadd.f32 %v721, %v1325
    %v1327 = vpop.f32.mrf.mxu0
    %v1328 = vadd.f32 %v721, %v1327
    %1329 = vmatmul.bf16.gmra.mxu0 %v563
    %v1330 = vpop.f32.mrf.mxu0
    %v1331 = vadd.f32 %v721, %v1330
    %v1332 = vpop.f32.mrf.mxu0
    %v1333 = vadd.f32 %v721, %v1332
    %1334 = vmatmul.bf16.gmra.mxu0 %v565
    %v1335 = vpop.f32.mrf.mxu0
    %v1336 = vadd.f32 %v721, %v1335
    %v1337 = vpop.f32.mrf.mxu0
    %v1338 = vadd.f32 %v721, %v1337
    %1339 = vmatmul.bf16.gmra.mxu0 %v567
    %v1340 = vpop.f32.mrf.mxu0
    %v1341 = vadd.f32 %v721, %v1340
    %v1342 = vpop.f32.mrf.mxu0
    %v1343 = vadd.f32 %v721, %v1342
    %1344 = vmatmul.bf16.gmra.mxu0 %v569
    %v1345 = vpop.f32.mrf.mxu0
    %v1346 = vadd.f32 %v721, %v1345
    %v1347 = vpop.f32.mrf.mxu0
    %v1348 = vadd.f32 %v721, %v1347
    %1349 = vmatmul.bf16.gmra.mxu0 %v571
    %v1350 = vpop.f32.mrf.mxu0
    %v1351 = vadd.f32 %v721, %v1350
    %v1352 = vpop.f32.mrf.mxu0
    %v1353 = vadd.f32 %v721, %v1352
    %1354 = vmatmul.bf16.gmra.mxu0 %v573
    %v1355 = vpop.f32.mrf.mxu0
    %v1356 = vadd.f32 %v721, %v1355
    %v1357 = vpop.f32.mrf.mxu0
    %v1358 = vadd.f32 %v721, %v1357
    %1359 = vmatmul.bf16.gmra.mxu0 %v575
    %v1360 = vpop.f32.mrf.mxu0
    %v1361 = vadd.f32 %v721, %v1360
    %v1362 = vpop.f32.mrf.mxu0
    %v1363 = vadd.f32 %v721, %v1362
    %1364 = vmatmul.bf16.gmra.mxu0 %v577
    %v1365 = vpop.f32.mrf.mxu0
    %v1366 = vadd.f32 %v721, %v1365
    %v1367 = vpop.f32.mrf.mxu0
    %v1368 = vadd.f32 %v721, %v1367
    %1369 = vmatmul.bf16.gmra.mxu0 %v579
    %v1370 = vpop.f32.mrf.mxu0
    %v1371 = vadd.f32 %v721, %v1370
    %v1372 = vpop.f32.mrf.mxu0
    %v1373 = vadd.f32 %v721, %v1372
    %1374 = vmatmul.bf16.gmra.mxu0 %v581
    %v1375 = vpop.f32.mrf.mxu0
    %v1376 = vadd.f32 %v721, %v1375
    %v1377 = vpop.f32.mrf.mxu0
    %v1378 = vadd.f32 %v721, %v1377
    %1379 = vmatmul.bf16.gmra.mxu0 %v583
    %v1380 = vpop.f32.mrf.mxu0
    %v1381 = vadd.f32 %v721, %v1380
    %v1382 = vpop.f32.mrf.mxu0
    %v1383 = vadd.f32 %v721, %v1382
    %1384 = vmatmul.bf16.gmra.mxu0 %v585
    %v1385 = vpop.f32.mrf.mxu0
    %v1386 = vadd.f32 %v721, %v1385
    %v1387 = vpop.f32.mrf.mxu0
    %v1388 = vadd.f32 %v721, %v1387
    %1389 = vmatmul.bf16.gmra.mxu0 %v587
    %v1390 = vpop.f32.mrf.mxu0
    %v1391 = vadd.f32 %v721, %v1390
    %v1392 = vpop.f32.mrf.mxu0
    %v1393 = vadd.f32 %v721, %v1392
    %1394 = vmatmul.bf16.gmra.mxu0 %v589
    %v1395 = vpop.f32.mrf.mxu0
    %v1396 = vadd.f32 %v721, %v1395
    %v1397 = vpop.f32.mrf.mxu0
    %v1398 = vadd.f32 %v721, %v1397
    %1399 = vdwg.mxu0
    %1400 = vmatpush.bf16.msra.mxu0 %v1192
    %1401 = vmatpush.bf16.msra.mxu0 %v1185
    %1402 = vmatpush.bf16.msra.mxu0 %v1178
    %1403 = vmatpush.bf16.msra.mxu0 %v1171
    %1404 = vmatpush.bf16.msra.mxu0 %v1164
    %1405 = vmatpush.bf16.msra.mxu0 %v1157
    %1406 = vmatpush.bf16.msra.mxu0 %v1150
    %1407 = vmatpush.bf16.msra.mxu0 %v1143
    %1408 = vmatmul.bf16.gmra.mxu0 %v560
    %v1409 = vpop.f32.mrf.mxu0
    %v1410 = vadd.f32 %v1321, %v1409
    %v1411 = vpop.f32.mrf.mxu0
    %v1412 = vadd.f32 %v1323, %v1411
    %1413 = vmatmul.bf16.gmra.mxu0 %v562
    %v1414 = vpop.f32.mrf.mxu0
    %v1415 = vadd.f32 %v1326, %v1414
    %v1416 = vpop.f32.mrf.mxu0
    %v1417 = vadd.f32 %v1328, %v1416
    %1418 = vmatmul.bf16.gmra.mxu0 %v564
    %v1419 = vpop.f32.mrf.mxu0
    %v1420 = vadd.f32 %v1331, %v1419
    %v1421 = vpop.f32.mrf.mxu0
    %v1422 = vadd.f32 %v1333, %v1421
    %1423 = vmatmul.bf16.gmra.mxu0 %v566
    %v1424 = vpop.f32.mrf.mxu0
    %v1425 = vadd.f32 %v1336, %v1424
    %v1426 = vpop.f32.mrf.mxu0
    %v1427 = vadd.f32 %v1338, %v1426
    %1428 = vmatmul.bf16.gmra.mxu0 %v568
    %v1429 = vpop.f32.mrf.mxu0
    %v1430 = vadd.f32 %v1341, %v1429
    %v1431 = vpop.f32.mrf.mxu0
    %v1432 = vadd.f32 %v1343, %v1431
    %1433 = vmatmul.bf16.gmra.mxu0 %v570
    %v1434 = vpop.f32.mrf.mxu0
    %v1435 = vadd.f32 %v1346, %v1434
    %v1436 = vpop.f32.mrf.mxu0
    %v1437 = vadd.f32 %v1348, %v1436
    %1438 = vmatmul.bf16.gmra.mxu0 %v572
    %v1439 = vpop.f32.mrf.mxu0
    %v1440 = vadd.f32 %v1351, %v1439
    %v1441 = vpop.f32.mrf.mxu0
    %v1442 = vadd.f32 %v1353, %v1441
    %1443 = vmatmul.bf16.gmra.mxu0 %v574
    %v1444 = vpop.f32.mrf.mxu0
    %v1445 = vadd.f32 %v1356, %v1444
    %v1446 = vpop.f32.mrf.mxu0
    %v1447 = vadd.f32 %v1358, %v1446
    %1448 = vmatmul.bf16.gmra.mxu0 %v576
    %v1449 = vpop.f32.mrf.mxu0
    %v1450 = vadd.f32 %v1361, %v1449
    %v1451 = vpop.f32.mrf.mxu0
    %v1452 = vadd.f32 %v1363, %v1451
    %1453 = vmatmul.bf16.gmra.mxu0 %v578
    %v1454 = vpop.f32.mrf.mxu0
    %v1455 = vadd.f32 %v1366, %v1454
    %v1456 = vpop.f32.mrf.mxu0
    %v1457 = vadd.f32 %v1368, %v1456
    %1458 = vmatmul.bf16.gmra.mxu0 %v580
    %v1459 = vpop.f32.mrf.mxu0
    %v1460 = vadd.f32 %v1371, %v1459
    %v1461 = vpop.f32.mrf.mxu0
    %v1462 = vadd.f32 %v1373, %v1461
    %1463 = vmatmul.bf16.gmra.mxu0 %v582
    %v1464 = vpop.f32.mrf.mxu0
    %v1465 = vadd.f32 %v1376, %v1464
    %v1466 = vpop.f32.mrf.mxu0
    %v1467 = vadd.f32 %v1378, %v1466
    %1468 = vmatmul.bf16.gmra.mxu0 %v584
    %v1469 = vpop.f32.mrf.mxu0
    %v1470 = vadd.f32 %v1381, %v1469
    %v1471 = vpop.f32.mrf.mxu0
    %v1472 = vadd.f32 %v1383, %v1471
    %1473 = vmatmul.bf16.gmra.mxu0 %v586
    %v1474 = vpop.f32.mrf.mxu0
    %v1475 = vadd.f32 %v1386, %v1474
    %v1476 = vpop.f32.mrf.mxu0
    %v1477 = vadd.f32 %v1388, %v1476
    %1478 = vmatmul.bf16.gmra.mxu0 %v588
    %v1479 = vpop.f32.mrf.mxu0
    %v1480 = vadd.f32 %v1391, %v1479
    %v1481 = vpop.f32.mrf.mxu0
    %v1482 = vadd.f32 %v1393, %v1481
    %1483 = vmatmul.bf16.gmra.mxu0 %v590
    %v1484 = vpop.f32.mrf.mxu0
    %v1485 = vadd.f32 %v1396, %v1484
    %v1486 = vpop.f32.mrf.mxu0
    %v1487 = vadd.f32 %v1398, %v1486
    %1488 = vdwg.mxu0
    %1489 = vmatpush.bf16.msra.mxu0 %v1137
    %1490 = vmatpush.bf16.msra.mxu0 %v1130
    %1491 = vmatpush.bf16.msra.mxu0 %v1123
    %1492 = vmatpush.bf16.msra.mxu0 %v1116
    %1493 = vmatpush.bf16.msra.mxu0 %v1109
    %1494 = vmatpush.bf16.msra.mxu0 %v1102
    %1495 = vmatpush.bf16.msra.mxu0 %v1095
    %1496 = vmatpush.bf16.msra.mxu0 %v1088
    %1497 = vmatmul.bf16.gmra.mxu0 %v559
    %v1498 = vpop.f32.mrf.mxu0
    %v1499 = vadd.f32 %v722, %v1498
    %v1500 = vpop.f32.mrf.mxu0
    %v1501 = vadd.f32 %v722, %v1500
    %1502 = vmatmul.bf16.gmra.mxu0 %v561
    %v1503 = vpop.f32.mrf.mxu0
    %v1504 = vadd.f32 %v722, %v1503
    %v1505 = vpop.f32.mrf.mxu0
    %v1506 = vadd.f32 %v722, %v1505
    %1507 = vmatmul.bf16.gmra.mxu0 %v563
    %v1508 = vpop.f32.mrf.mxu0
    %v1509 = vadd.f32 %v722, %v1508
    %v1510 = vpop.f32.mrf.mxu0
    %v1511 = vadd.f32 %v722, %v1510
    %1512 = vmatmul.bf16.gmra.mxu0 %v565
    %v1513 = vpop.f32.mrf.mxu0
    %v1514 = vadd.f32 %v722, %v1513
    %v1515 = vpop.f32.mrf.mxu0
    %v1516 = vadd.f32 %v722, %v1515
    %1517 = vmatmul.bf16.gmra.mxu0 %v567
    %v1518 = vpop.f32.mrf.mxu0
    %v1519 = vadd.f32 %v722, %v1518
    %v1520 = vpop.f32.mrf.mxu0
    %v1521 = vadd.f32 %v722, %v1520
    %1522 = vmatmul.bf16.gmra.mxu0 %v569
    %v1523 = vpop.f32.mrf.mxu0
    %v1524 = vadd.f32 %v722, %v1523
    %v1525 = vpop.f32.mrf.mxu0
    %v1526 = vadd.f32 %v722, %v1525
    %1527 = vmatmul.bf16.gmra.mxu0 %v571
    %v1528 = vpop.f32.mrf.mxu0
    %v1529 = vadd.f32 %v722, %v1528
    %v1530 = vpop.f32.mrf.mxu0
    %v1531 = vadd.f32 %v722, %v1530
    %1532 = vmatmul.bf16.gmra.mxu0 %v573
    %v1533 = vpop.f32.mrf.mxu0
    %v1534 = vadd.f32 %v722, %v1533
    %v1535 = vpop.f32.mrf.mxu0
    %v1536 = vadd.f32 %v722, %v1535
    %1537 = vmatmul.bf16.gmra.mxu0 %v575
    %v1538 = vpop.f32.mrf.mxu0
    %v1539 = vadd.f32 %v722, %v1538
    %v1540 = vpop.f32.mrf.mxu0
    %v1541 = vadd.f32 %v722, %v1540
    %1542 = vmatmul.bf16.gmra.mxu0 %v577
    %v1543 = vpop.f32.mrf.mxu0
    %v1544 = vadd.f32 %v722, %v1543
    %v1545 = vpop.f32.mrf.mxu0
    %v1546 = vadd.f32 %v722, %v1545
    %1547 = vmatmul.bf16.gmra.mxu0 %v579
    %v1548 = vpop.f32.mrf.mxu0
    %v1549 = vadd.f32 %v722, %v1548
    %v1550 = vpop.f32.mrf.mxu0
    %v1551 = vadd.f32 %v722, %v1550
    %1552 = vmatmul.bf16.gmra.mxu0 %v581
    %v1553 = vpop.f32.mrf.mxu0
    %v1554 = vadd.f32 %v722, %v1553
    %v1555 = vpop.f32.mrf.mxu0
    %v1556 = vadd.f32 %v722, %v1555
    %1557 = vmatmul.bf16.gmra.mxu0 %v583
    %v1558 = vpop.f32.mrf.mxu0
    %v1559 = vadd.f32 %v722, %v1558
    %v1560 = vpop.f32.mrf.mxu0
    %v1561 = vadd.f32 %v722, %v1560
    %1562 = vmatmul.bf16.gmra.mxu0 %v585
    %v1563 = vpop.f32.mrf.mxu0
    %v1564 = vadd.f32 %v722, %v1563
    %v1565 = vpop.f32.mrf.mxu0
    %v1566 = vadd.f32 %v722, %v1565
    %1567 = vmatmul.bf16.gmra.mxu0 %v587
    %v1568 = vpop.f32.mrf.mxu0
    %v1569 = vadd.f32 %v722, %v1568
    %v1570 = vpop.f32.mrf.mxu0
    %v1571 = vadd.f32 %v722, %v1570
    %1572 = vmatmul.bf16.gmra.mxu0 %v589
    %v1573 = vpop.f32.mrf.mxu0
    %v1574 = vadd.f32 %v722, %v1573
    %v1575 = vpop.f32.mrf.mxu0
    %v1576 = vadd.f32 %v722, %v1575
    %1577 = vdwg.mxu0
    %1578 = vmatpush.bf16.msra.mxu0 %v1193
    %1579 = vmatpush.bf16.msra.mxu0 %v1186
    %1580 = vmatpush.bf16.msra.mxu0 %v1179
    %1581 = vmatpush.bf16.msra.mxu0 %v1172
    %1582 = vmatpush.bf16.msra.mxu0 %v1165
    %1583 = vmatpush.bf16.msra.mxu0 %v1158
    %1584 = vmatpush.bf16.msra.mxu0 %v1151
    %1585 = vmatpush.bf16.msra.mxu0 %v1144
    %1586 = vmatmul.bf16.gmra.mxu0 %v560
    %v1587 = vpop.f32.mrf.mxu0
    %v1588 = vadd.f32 %v1499, %v1587
    %v1589 = vpop.f32.mrf.mxu0
    %v1590 = vadd.f32 %v1501, %v1589
    %1591 = vmatmul.bf16.gmra.mxu0 %v562
    %v1592 = vpop.f32.mrf.mxu0
    %v1593 = vadd.f32 %v1504, %v1592
    %v1594 = vpop.f32.mrf.mxu0
    %v1595 = vadd.f32 %v1506, %v1594
    %1596 = vmatmul.bf16.gmra.mxu0 %v564
    %v1597 = vpop.f32.mrf.mxu0
    %v1598 = vadd.f32 %v1509, %v1597
    %v1599 = vpop.f32.mrf.mxu0
    %v1600 = vadd.f32 %v1511, %v1599
    %1601 = vmatmul.bf16.gmra.mxu0 %v566
    %v1602 = vpop.f32.mrf.mxu0
    %v1603 = vadd.f32 %v1514, %v1602
    %v1604 = vpop.f32.mrf.mxu0
    %v1605 = vadd.f32 %v1516, %v1604
    %1606 = vmatmul.bf16.gmra.mxu0 %v568
    %v1607 = vpop.f32.mrf.mxu0
    %v1608 = vadd.f32 %v1519, %v1607
    %v1609 = vpop.f32.mrf.mxu0
    %v1610 = vadd.f32 %v1521, %v1609
    %1611 = vmatmul.bf16.gmra.mxu0 %v570
    %v1612 = vpop.f32.mrf.mxu0
    %v1613 = vadd.f32 %v1524, %v1612
    %v1614 = vpop.f32.mrf.mxu0
    %v1615 = vadd.f32 %v1526, %v1614
    %1616 = vmatmul.bf16.gmra.mxu0 %v572
    %v1617 = vpop.f32.mrf.mxu0
    %v1618 = vadd.f32 %v1529, %v1617
    %v1619 = vpop.f32.mrf.mxu0
    %v1620 = vadd.f32 %v1531, %v1619
    %1621 = vmatmul.bf16.gmra.mxu0 %v574
    %v1622 = vpop.f32.mrf.mxu0
    %v1623 = vadd.f32 %v1534, %v1622
    %v1624 = vpop.f32.mrf.mxu0
    %v1625 = vadd.f32 %v1536, %v1624
    %1626 = vmatmul.bf16.gmra.mxu0 %v576
    %v1627 = vpop.f32.mrf.mxu0
    %v1628 = vadd.f32 %v1539, %v1627
    %v1629 = vpop.f32.mrf.mxu0
    %v1630 = vadd.f32 %v1541, %v1629
    %1631 = vmatmul.bf16.gmra.mxu0 %v578
    %v1632 = vpop.f32.mrf.mxu0
    %v1633 = vadd.f32 %v1544, %v1632
    %v1634 = vpop.f32.mrf.mxu0
    %v1635 = vadd.f32 %v1546, %v1634
    %1636 = vmatmul.bf16.gmra.mxu0 %v580
    %v1637 = vpop.f32.mrf.mxu0
    %v1638 = vadd.f32 %v1549, %v1637
    %v1639 = vpop.f32.mrf.mxu0
    %v1640 = vadd.f32 %v1551, %v1639
    %1641 = vmatmul.bf16.gmra.mxu0 %v582
    %v1642 = vpop.f32.mrf.mxu0
    %v1643 = vadd.f32 %v1554, %v1642
    %v1644 = vpop.f32.mrf.mxu0
    %v1645 = vadd.f32 %v1556, %v1644
    %1646 = vmatmul.bf16.gmra.mxu0 %v584
    %v1647 = vpop.f32.mrf.mxu0
    %v1648 = vadd.f32 %v1559, %v1647
    %v1649 = vpop.f32.mrf.mxu0
    %v1650 = vadd.f32 %v1561, %v1649
    %1651 = vmatmul.bf16.gmra.mxu0 %v586
    %v1652 = vpop.f32.mrf.mxu0
    %v1653 = vadd.f32 %v1564, %v1652
    %v1654 = vpop.f32.mrf.mxu0
    %v1655 = vadd.f32 %v1566, %v1654
    %1656 = vmatmul.bf16.gmra.mxu0 %v588
    %v1657 = vpop.f32.mrf.mxu0
    %v1658 = vadd.f32 %v1569, %v1657
    %v1659 = vpop.f32.mrf.mxu0
    %v1660 = vadd.f32 %v1571, %v1659
    %1661 = vmatmul.bf16.gmra.mxu0 %v590
    %v1662 = vpop.f32.mrf.mxu0
    %v1663 = vadd.f32 %v1574, %v1662
    %v1664 = vpop.f32.mrf.mxu0
    %v1665 = vadd.f32 %v1576, %v1664
    %1666 = vdwg.mxu0
    %1667 = vmatpush.bf16.msra.mxu0 %v1138
    %1668 = vmatpush.bf16.msra.mxu0 %v1131
    %1669 = vmatpush.bf16.msra.mxu0 %v1124
    %1670 = vmatpush.bf16.msra.mxu0 %v1117
    %1671 = vmatpush.bf16.msra.mxu0 %v1110
    %1672 = vmatpush.bf16.msra.mxu0 %v1103
    %1673 = vmatpush.bf16.msra.mxu0 %v1096
    %1674 = vmatpush.bf16.msra.mxu0 %v1089
    %1675 = vmatmul.bf16.gmra.mxu0 %v559
    %v1676 = vpop.f32.mrf.mxu0
    %v1677 = vadd.f32 %v723, %v1676
    %v1678 = vpop.f32.mrf.mxu0
    %v1679 = vadd.f32 %v723, %v1678
    %1680 = vmatmul.bf16.gmra.mxu0 %v561
    %v1681 = vpop.f32.mrf.mxu0
    %v1682 = vadd.f32 %v723, %v1681
    %v1683 = vpop.f32.mrf.mxu0
    %v1684 = vadd.f32 %v723, %v1683
    %1685 = vmatmul.bf16.gmra.mxu0 %v563
    %v1686 = vpop.f32.mrf.mxu0
    %v1687 = vadd.f32 %v723, %v1686
    %v1688 = vpop.f32.mrf.mxu0
    %v1689 = vadd.f32 %v723, %v1688
    %1690 = vmatmul.bf16.gmra.mxu0 %v565
    %v1691 = vpop.f32.mrf.mxu0
    %v1692 = vadd.f32 %v723, %v1691
    %v1693 = vpop.f32.mrf.mxu0
    %v1694 = vadd.f32 %v723, %v1693
    %1695 = vmatmul.bf16.gmra.mxu0 %v567
    %v1696 = vpop.f32.mrf.mxu0
    %v1697 = vadd.f32 %v723, %v1696
    %v1698 = vpop.f32.mrf.mxu0
    %v1699 = vadd.f32 %v723, %v1698
    %1700 = vmatmul.bf16.gmra.mxu0 %v569
    %v1701 = vpop.f32.mrf.mxu0
    %v1702 = vadd.f32 %v723, %v1701
    %v1703 = vpop.f32.mrf.mxu0
    %v1704 = vadd.f32 %v723, %v1703
    %1705 = vmatmul.bf16.gmra.mxu0 %v571
    %v1706 = vpop.f32.mrf.mxu0
    %v1707 = vadd.f32 %v723, %v1706
    %v1708 = vpop.f32.mrf.mxu0
    %v1709 = vadd.f32 %v723, %v1708
    %1710 = vmatmul.bf16.gmra.mxu0 %v573
    %v1711 = vpop.f32.mrf.mxu0
    %v1712 = vadd.f32 %v723, %v1711
    %v1713 = vpop.f32.mrf.mxu0
    %v1714 = vadd.f32 %v723, %v1713
    %1715 = vmatmul.bf16.gmra.mxu0 %v575
    %v1716 = vpop.f32.mrf.mxu0
    %v1717 = vadd.f32 %v723, %v1716
    %v1718 = vpop.f32.mrf.mxu0
    %v1719 = vadd.f32 %v723, %v1718
    %1720 = vmatmul.bf16.gmra.mxu0 %v577
    %v1721 = vpop.f32.mrf.mxu0
    %v1722 = vadd.f32 %v723, %v1721
    %v1723 = vpop.f32.mrf.mxu0
    %v1724 = vadd.f32 %v723, %v1723
    %1725 = vmatmul.bf16.gmra.mxu0 %v579
    %v1726 = vpop.f32.mrf.mxu0
    %v1727 = vadd.f32 %v723, %v1726
    %v1728 = vpop.f32.mrf.mxu0
    %v1729 = vadd.f32 %v723, %v1728
    %1730 = vmatmul.bf16.gmra.mxu0 %v581
    %v1731 = vpop.f32.mrf.mxu0
    %v1732 = vadd.f32 %v723, %v1731
    %v1733 = vpop.f32.mrf.mxu0
    %v1734 = vadd.f32 %v723, %v1733
    %1735 = vmatmul.bf16.gmra.mxu0 %v583
    %v1736 = vpop.f32.mrf.mxu0
    %v1737 = vadd.f32 %v723, %v1736
    %v1738 = vpop.f32.mrf.mxu0
    %v1739 = vadd.f32 %v723, %v1738
    %1740 = vmatmul.bf16.gmra.mxu0 %v585
    %v1741 = vpop.f32.mrf.mxu0
    %v1742 = vadd.f32 %v723, %v1741
    %v1743 = vpop.f32.mrf.mxu0
    %v1744 = vadd.f32 %v723, %v1743
    %1745 = vmatmul.bf16.gmra.mxu0 %v587
    %v1746 = vpop.f32.mrf.mxu0
    %v1747 = vadd.f32 %v723, %v1746
    %v1748 = vpop.f32.mrf.mxu0
    %v1749 = vadd.f32 %v723, %v1748
    %1750 = vmatmul.bf16.gmra.mxu0 %v589
    %v1751 = vpop.f32.mrf.mxu0
    %v1752 = vadd.f32 %v723, %v1751
    %v1753 = vpop.f32.mrf.mxu0
    %v1754 = vadd.f32 %v723, %v1753
    %1755 = vdwg.mxu0
    %1756 = vmatpush.bf16.msra.mxu0 %v1194
    %1757 = vmatpush.bf16.msra.mxu0 %v1187
    %1758 = vmatpush.bf16.msra.mxu0 %v1180
    %1759 = vmatpush.bf16.msra.mxu0 %v1173
    %1760 = vmatpush.bf16.msra.mxu0 %v1166
    %1761 = vmatpush.bf16.msra.mxu0 %v1159
    %1762 = vmatpush.bf16.msra.mxu0 %v1152
    %1763 = vmatpush.bf16.msra.mxu0 %v1145
    %1764 = vmatmul.bf16.gmra.mxu0 %v560
    %v1765 = vpop.f32.mrf.mxu0
    %v1766 = vadd.f32 %v1677, %v1765
    %v1767 = vpop.f32.mrf.mxu0
    %v1768 = vadd.f32 %v1679, %v1767
    %1769 = vmatmul.bf16.gmra.mxu0 %v562
    %v1770 = vpop.f32.mrf.mxu0
    %v1771 = vadd.f32 %v1682, %v1770
    %v1772 = vpop.f32.mrf.mxu0
    %v1773 = vadd.f32 %v1684, %v1772
    %1774 = vmatmul.bf16.gmra.mxu0 %v564
    %v1775 = vpop.f32.mrf.mxu0
    %v1776 = vadd.f32 %v1687, %v1775
    %v1777 = vpop.f32.mrf.mxu0
    %v1778 = vadd.f32 %v1689, %v1777
    %1779 = vmatmul.bf16.gmra.mxu0 %v566
    %v1780 = vpop.f32.mrf.mxu0
    %v1781 = vadd.f32 %v1692, %v1780
    %v1782 = vpop.f32.mrf.mxu0
    %v1783 = vadd.f32 %v1694, %v1782
    %1784 = vmatmul.bf16.gmra.mxu0 %v568
    %v1785 = vpop.f32.mrf.mxu0
    %v1786 = vadd.f32 %v1697, %v1785
    %v1787 = vpop.f32.mrf.mxu0
    %v1788 = vadd.f32 %v1699, %v1787
    %1789 = vmatmul.bf16.gmra.mxu0 %v570
    %v1790 = vpop.f32.mrf.mxu0
    %v1791 = vadd.f32 %v1702, %v1790
    %v1792 = vpop.f32.mrf.mxu0
    %v1793 = vadd.f32 %v1704, %v1792
    %1794 = vmatmul.bf16.gmra.mxu0 %v572
    %v1795 = vpop.f32.mrf.mxu0
    %v1796 = vadd.f32 %v1707, %v1795
    %v1797 = vpop.f32.mrf.mxu0
    %v1798 = vadd.f32 %v1709, %v1797
    %1799 = vmatmul.bf16.gmra.mxu0 %v574
    %v1800 = vpop.f32.mrf.mxu0
    %v1801 = vadd.f32 %v1712, %v1800
    %v1802 = vpop.f32.mrf.mxu0
    %v1803 = vadd.f32 %v1714, %v1802
    %1804 = vmatmul.bf16.gmra.mxu0 %v576
    %v1805 = vpop.f32.mrf.mxu0
    %v1806 = vadd.f32 %v1717, %v1805
    %v1807 = vpop.f32.mrf.mxu0
    %v1808 = vadd.f32 %v1719, %v1807
    %1809 = vmatmul.bf16.gmra.mxu0 %v578
    %v1810 = vpop.f32.mrf.mxu0
    %v1811 = vadd.f32 %v1722, %v1810
    %v1812 = vpop.f32.mrf.mxu0
    %v1813 = vadd.f32 %v1724, %v1812
    %1814 = vmatmul.bf16.gmra.mxu0 %v580
    %v1815 = vpop.f32.mrf.mxu0
    %v1816 = vadd.f32 %v1727, %v1815
    %v1817 = vpop.f32.mrf.mxu0
    %v1818 = vadd.f32 %v1729, %v1817
    %1819 = vmatmul.bf16.gmra.mxu0 %v582
    %v1820 = vpop.f32.mrf.mxu0
    %v1821 = vadd.f32 %v1732, %v1820
    %v1822 = vpop.f32.mrf.mxu0
    %v1823 = vadd.f32 %v1734, %v1822
    %1824 = vmatmul.bf16.gmra.mxu0 %v584
    %v1825 = vpop.f32.mrf.mxu0
    %v1826 = vadd.f32 %v1737, %v1825
    %v1827 = vpop.f32.mrf.mxu0
    %v1828 = vadd.f32 %v1739, %v1827
    %1829 = vmatmul.bf16.gmra.mxu0 %v586
    %v1830 = vpop.f32.mrf.mxu0
    %v1831 = vadd.f32 %v1742, %v1830
    %v1832 = vpop.f32.mrf.mxu0
    %v1833 = vadd.f32 %v1744, %v1832
    %1834 = vmatmul.bf16.gmra.mxu0 %v588
    %v1835 = vpop.f32.mrf.mxu0
    %v1836 = vadd.f32 %v1747, %v1835
    %v1837 = vpop.f32.mrf.mxu0
    %v1838 = vadd.f32 %v1749, %v1837
    %1839 = vmatmul.bf16.gmra.mxu0 %v590
    %v1840 = vpop.f32.mrf.mxu0
    %v1841 = vadd.f32 %v1752, %v1840
    %v1842 = vpop.f32.mrf.mxu0
    %v1843 = vadd.f32 %v1754, %v1842
    %1844 = vdwg.mxu0
    %1845 = vmatpush.bf16.msra.mxu0 %v1139
    %1846 = vmatpush.bf16.msra.mxu0 %v1132
    %1847 = vmatpush.bf16.msra.mxu0 %v1125
    %1848 = vmatpush.bf16.msra.mxu0 %v1118
    %1849 = vmatpush.bf16.msra.mxu0 %v1111
    %1850 = vmatpush.bf16.msra.mxu0 %v1104
    %1851 = vmatpush.bf16.msra.mxu0 %v1097
    %1852 = vmatpush.bf16.msra.mxu0 %v1090
    %1853 = vmatmul.bf16.gmra.mxu0 %v559
    %v1854 = vpop.f32.mrf.mxu0
    %v1855 = vadd.f32 %v724, %v1854
    %v1856 = vpop.f32.mrf.mxu0
    %v1857 = vadd.f32 %v724, %v1856
    %1858 = vmatmul.bf16.gmra.mxu0 %v561
    %v1859 = vpop.f32.mrf.mxu0
    %v1860 = vadd.f32 %v724, %v1859
    %v1861 = vpop.f32.mrf.mxu0
    %v1862 = vadd.f32 %v724, %v1861
    %1863 = vmatmul.bf16.gmra.mxu0 %v563
    %v1864 = vpop.f32.mrf.mxu0
    %v1865 = vadd.f32 %v724, %v1864
    %v1866 = vpop.f32.mrf.mxu0
    %v1867 = vadd.f32 %v724, %v1866
    %1868 = vmatmul.bf16.gmra.mxu0 %v565
    %v1869 = vpop.f32.mrf.mxu0
    %v1870 = vadd.f32 %v724, %v1869
    %v1871 = vpop.f32.mrf.mxu0
    %v1872 = vadd.f32 %v724, %v1871
    %1873 = vmatmul.bf16.gmra.mxu0 %v567
    %v1874 = vpop.f32.mrf.mxu0
    %v1875 = vadd.f32 %v724, %v1874
    %v1876 = vpop.f32.mrf.mxu0
    %v1877 = vadd.f32 %v724, %v1876
    %1878 = vmatmul.bf16.gmra.mxu0 %v569
    %v1879 = vpop.f32.mrf.mxu0
    %v1880 = vadd.f32 %v724, %v1879
    %v1881 = vpop.f32.mrf.mxu0
    %v1882 = vadd.f32 %v724, %v1881
    %1883 = vmatmul.bf16.gmra.mxu0 %v571
    %v1884 = vpop.f32.mrf.mxu0
    %v1885 = vadd.f32 %v724, %v1884
    %v1886 = vpop.f32.mrf.mxu0
    %v1887 = vadd.f32 %v724, %v1886
    %1888 = vmatmul.bf16.gmra.mxu0 %v573
    %v1889 = vpop.f32.mrf.mxu0
    %v1890 = vadd.f32 %v724, %v1889
    %v1891 = vpop.f32.mrf.mxu0
    %v1892 = vadd.f32 %v724, %v1891
    %1893 = vmatmul.bf16.gmra.mxu0 %v575
    %v1894 = vpop.f32.mrf.mxu0
    %v1895 = vadd.f32 %v724, %v1894
    %v1896 = vpop.f32.mrf.mxu0
    %v1897 = vadd.f32 %v724, %v1896
    %1898 = vmatmul.bf16.gmra.mxu0 %v577
    %v1899 = vpop.f32.mrf.mxu0
    %v1900 = vadd.f32 %v724, %v1899
    %v1901 = vpop.f32.mrf.mxu0
    %v1902 = vadd.f32 %v724, %v1901
    %1903 = vmatmul.bf16.gmra.mxu0 %v579
    %v1904 = vpop.f32.mrf.mxu0
    %v1905 = vadd.f32 %v724, %v1904
    %v1906 = vpop.f32.mrf.mxu0
    %v1907 = vadd.f32 %v724, %v1906
    %1908 = vmatmul.bf16.gmra.mxu0 %v581
    %v1909 = vpop.f32.mrf.mxu0
    %v1910 = vadd.f32 %v724, %v1909
    %v1911 = vpop.f32.mrf.mxu0
    %v1912 = vadd.f32 %v724, %v1911
    %1913 = vmatmul.bf16.gmra.mxu0 %v583
    %v1914 = vpop.f32.mrf.mxu0
    %v1915 = vadd.f32 %v724, %v1914
    %v1916 = vpop.f32.mrf.mxu0
    %v1917 = vadd.f32 %v724, %v1916
    %1918 = vmatmul.bf16.gmra.mxu0 %v585
    %v1919 = vpop.f32.mrf.mxu0
    %v1920 = vadd.f32 %v724, %v1919
    %v1921 = vpop.f32.mrf.mxu0
    %v1922 = vadd.f32 %v724, %v1921
    %1923 = vmatmul.bf16.gmra.mxu0 %v587
    %v1924 = vpop.f32.mrf.mxu0
    %v1925 = vadd.f32 %v724, %v1924
    %v1926 = vpop.f32.mrf.mxu0
    %v1927 = vadd.f32 %v724, %v1926
    %1928 = vmatmul.bf16.gmra.mxu0 %v589
    %v1929 = vpop.f32.mrf.mxu0
    %v1930 = vadd.f32 %v724, %v1929
    %v1931 = vpop.f32.mrf.mxu0
    %v1932 = vadd.f32 %v724, %v1931
    %1933 = vdwg.mxu0
    %1934 = vmatpush.bf16.msra.mxu0 %v1195
    %1935 = vmatpush.bf16.msra.mxu0 %v1188
    %1936 = vmatpush.bf16.msra.mxu0 %v1181
    %1937 = vmatpush.bf16.msra.mxu0 %v1174
    %1938 = vmatpush.bf16.msra.mxu0 %v1167
    %1939 = vmatpush.bf16.msra.mxu0 %v1160
    %1940 = vmatpush.bf16.msra.mxu0 %v1153
    %1941 = vmatpush.bf16.msra.mxu0 %v1146
    %1942 = vmatmul.bf16.gmra.mxu0 %v560
    %v1943 = vpop.f32.mrf.mxu0
    %v1944 = vadd.f32 %v1855, %v1943
    %v1945 = vpop.f32.mrf.mxu0
    %v1946 = vadd.f32 %v1857, %v1945
    %1947 = vmatmul.bf16.gmra.mxu0 %v562
    %v1948 = vpop.f32.mrf.mxu0
    %v1949 = vadd.f32 %v1860, %v1948
    %v1950 = vpop.f32.mrf.mxu0
    %v1951 = vadd.f32 %v1862, %v1950
    %1952 = vmatmul.bf16.gmra.mxu0 %v564
    %v1953 = vpop.f32.mrf.mxu0
    %v1954 = vadd.f32 %v1865, %v1953
    %v1955 = vpop.f32.mrf.mxu0
    %v1956 = vadd.f32 %v1867, %v1955
    %1957 = vmatmul.bf16.gmra.mxu0 %v566
    %v1958 = vpop.f32.mrf.mxu0
    %v1959 = vadd.f32 %v1870, %v1958
    %v1960 = vpop.f32.mrf.mxu0
    %v1961 = vadd.f32 %v1872, %v1960
    %1962 = vmatmul.bf16.gmra.mxu0 %v568
    %v1963 = vpop.f32.mrf.mxu0
    %v1964 = vadd.f32 %v1875, %v1963
    %v1965 = vpop.f32.mrf.mxu0
    %v1966 = vadd.f32 %v1877, %v1965
    %1967 = vmatmul.bf16.gmra.mxu0 %v570
    %v1968 = vpop.f32.mrf.mxu0
    %v1969 = vadd.f32 %v1880, %v1968
    %v1970 = vpop.f32.mrf.mxu0
    %v1971 = vadd.f32 %v1882, %v1970
    %1972 = vmatmul.bf16.gmra.mxu0 %v572
    %v1973 = vpop.f32.mrf.mxu0
    %v1974 = vadd.f32 %v1885, %v1973
    %v1975 = vpop.f32.mrf.mxu0
    %v1976 = vadd.f32 %v1887, %v1975
    %1977 = vmatmul.bf16.gmra.mxu0 %v574
    %v1978 = vpop.f32.mrf.mxu0
    %v1979 = vadd.f32 %v1890, %v1978
    %v1980 = vpop.f32.mrf.mxu0
    %v1981 = vadd.f32 %v1892, %v1980
    %1982 = vmatmul.bf16.gmra.mxu0 %v576
    %v1983 = vpop.f32.mrf.mxu0
    %v1984 = vadd.f32 %v1895, %v1983
    %v1985 = vpop.f32.mrf.mxu0
    %v1986 = vadd.f32 %v1897, %v1985
    %1987 = vmatmul.bf16.gmra.mxu0 %v578
    %v1988 = vpop.f32.mrf.mxu0
    %v1989 = vadd.f32 %v1900, %v1988
    %v1990 = vpop.f32.mrf.mxu0
    %v1991 = vadd.f32 %v1902, %v1990
    %1992 = vmatmul.bf16.gmra.mxu0 %v580
    %v1993 = vpop.f32.mrf.mxu0
    %v1994 = vadd.f32 %v1905, %v1993
    %v1995 = vpop.f32.mrf.mxu0
    %v1996 = vadd.f32 %v1907, %v1995
    %1997 = vmatmul.bf16.gmra.mxu0 %v582
    %v1998 = vpop.f32.mrf.mxu0
    %v1999 = vadd.f32 %v1910, %v1998
    %v2000 = vpop.f32.mrf.mxu0
    %v2001 = vadd.f32 %v1912, %v2000
    %2002 = vmatmul.bf16.gmra.mxu0 %v584
    %v2003 = vpop.f32.mrf.mxu0
    %v2004 = vadd.f32 %v1915, %v2003
    %v2005 = vpop.f32.mrf.mxu0
    %v2006 = vadd.f32 %v1917, %v2005
    %2007 = vmatmul.bf16.gmra.mxu0 %v586
    %v2008 = vpop.f32.mrf.mxu0
    %v2009 = vadd.f32 %v1920, %v2008
    %v2010 = vpop.f32.mrf.mxu0
    %v2011 = vadd.f32 %v1922, %v2010
    %2012 = vmatmul.bf16.gmra.mxu0 %v588
    %v2013 = vpop.f32.mrf.mxu0
    %v2014 = vadd.f32 %v1925, %v2013
    %v2015 = vpop.f32.mrf.mxu0
    %v2016 = vadd.f32 %v1927, %v2015
    %2017 = vmatmul.bf16.gmra.mxu0 %v590
    %v2018 = vpop.f32.mrf.mxu0
    %v2019 = vadd.f32 %v1930, %v2018
    %v2020 = vpop.f32.mrf.mxu0
    %v2021 = vadd.f32 %v1932, %v2020
    %2022 = vdwg.mxu0
    %2023 = vmatpush.bf16.msra.mxu0 %v1140
    %2024 = vmatpush.bf16.msra.mxu0 %v1133
    %2025 = vmatpush.bf16.msra.mxu0 %v1126
    %2026 = vmatpush.bf16.msra.mxu0 %v1119
    %2027 = vmatpush.bf16.msra.mxu0 %v1112
    %2028 = vmatpush.bf16.msra.mxu0 %v1105
    %2029 = vmatpush.bf16.msra.mxu0 %v1098
    %2030 = vmatpush.bf16.msra.mxu0 %v1091
    %2031 = vmatmul.bf16.gmra.mxu0 %v559
    %v2032 = vpop.f32.mrf.mxu0
    %v2033 = vadd.f32 %v725, %v2032
    %v2034 = vpop.f32.mrf.mxu0
    %v2035 = vadd.f32 %v725, %v2034
    %2036 = vmatmul.bf16.gmra.mxu0 %v561
    %v2037 = vpop.f32.mrf.mxu0
    %v2038 = vadd.f32 %v725, %v2037
    %v2039 = vpop.f32.mrf.mxu0
    %v2040 = vadd.f32 %v725, %v2039
    %2041 = vmatmul.bf16.gmra.mxu0 %v563
    %v2042 = vpop.f32.mrf.mxu0
    %v2043 = vadd.f32 %v725, %v2042
    %v2044 = vpop.f32.mrf.mxu0
    %v2045 = vadd.f32 %v725, %v2044
    %2046 = vmatmul.bf16.gmra.mxu0 %v565
    %v2047 = vpop.f32.mrf.mxu0
    %v2048 = vadd.f32 %v725, %v2047
    %v2049 = vpop.f32.mrf.mxu0
    %v2050 = vadd.f32 %v725, %v2049
    %2051 = vmatmul.bf16.gmra.mxu0 %v567
    %v2052 = vpop.f32.mrf.mxu0
    %v2053 = vadd.f32 %v725, %v2052
    %v2054 = vpop.f32.mrf.mxu0
    %v2055 = vadd.f32 %v725, %v2054
    %2056 = vmatmul.bf16.gmra.mxu0 %v569
    %v2057 = vpop.f32.mrf.mxu0
    %v2058 = vadd.f32 %v725, %v2057
    %v2059 = vpop.f32.mrf.mxu0
    %v2060 = vadd.f32 %v725, %v2059
    %2061 = vmatmul.bf16.gmra.mxu0 %v571
    %v2062 = vpop.f32.mrf.mxu0
    %v2063 = vadd.f32 %v725, %v2062
    %v2064 = vpop.f32.mrf.mxu0
    %v2065 = vadd.f32 %v725, %v2064
    %2066 = vmatmul.bf16.gmra.mxu0 %v573
    %v2067 = vpop.f32.mrf.mxu0
    %v2068 = vadd.f32 %v725, %v2067
    %v2069 = vpop.f32.mrf.mxu0
    %v2070 = vadd.f32 %v725, %v2069
    %2071 = vmatmul.bf16.gmra.mxu0 %v575
    %v2072 = vpop.f32.mrf.mxu0
    %v2073 = vadd.f32 %v725, %v2072
    %v2074 = vpop.f32.mrf.mxu0
    %v2075 = vadd.f32 %v725, %v2074
    %2076 = vmatmul.bf16.gmra.mxu0 %v577
    %v2077 = vpop.f32.mrf.mxu0
    %v2078 = vadd.f32 %v725, %v2077
    %v2079 = vpop.f32.mrf.mxu0
    %v2080 = vadd.f32 %v725, %v2079
    %2081 = vmatmul.bf16.gmra.mxu0 %v579
    %v2082 = vpop.f32.mrf.mxu0
    %v2083 = vadd.f32 %v725, %v2082
    %v2084 = vpop.f32.mrf.mxu0
    %v2085 = vadd.f32 %v725, %v2084
    %2086 = vmatmul.bf16.gmra.mxu0 %v581
    %v2087 = vpop.f32.mrf.mxu0
    %v2088 = vadd.f32 %v725, %v2087
    %v2089 = vpop.f32.mrf.mxu0
    %v2090 = vadd.f32 %v725, %v2089
    %2091 = vmatmul.bf16.gmra.mxu0 %v583
    %v2092 = vpop.f32.mrf.mxu0
    %v2093 = vadd.f32 %v725, %v2092
    %v2094 = vpop.f32.mrf.mxu0
    %v2095 = vadd.f32 %v725, %v2094
    %2096 = vmatmul.bf16.gmra.mxu0 %v585
    %v2097 = vpop.f32.mrf.mxu0
    %v2098 = vadd.f32 %v725, %v2097
    %v2099 = vpop.f32.mrf.mxu0
    %v2100 = vadd.f32 %v725, %v2099
    %2101 = vmatmul.bf16.gmra.mxu0 %v587
    %v2102 = vpop.f32.mrf.mxu0
    %v2103 = vadd.f32 %v725, %v2102
    %v2104 = vpop.f32.mrf.mxu0
    %v2105 = vadd.f32 %v725, %v2104
    %2106 = vmatmul.bf16.gmra.mxu0 %v589
    %v2107 = vpop.f32.mrf.mxu0
    %v2108 = vadd.f32 %v725, %v2107
    %v2109 = vpop.f32.mrf.mxu0
    %v2110 = vadd.f32 %v725, %v2109
    %2111 = vdwg.mxu0
    %2112 = vmatpush.bf16.msra.mxu0 %v1196
    %2113 = vmatpush.bf16.msra.mxu0 %v1189
    %2114 = vmatpush.bf16.msra.mxu0 %v1182
    %2115 = vmatpush.bf16.msra.mxu0 %v1175
    %2116 = vmatpush.bf16.msra.mxu0 %v1168
    %2117 = vmatpush.bf16.msra.mxu0 %v1161
    %2118 = vmatpush.bf16.msra.mxu0 %v1154
    %2119 = vmatpush.bf16.msra.mxu0 %v1147
    %2120 = vmatmul.bf16.gmra.mxu0 %v560
    %v2121 = vpop.f32.mrf.mxu0
    %v2122 = vadd.f32 %v2033, %v2121
    %v2123 = vpop.f32.mrf.mxu0
    %v2124 = vadd.f32 %v2035, %v2123
    %2125 = vmatmul.bf16.gmra.mxu0 %v562
    %v2126 = vpop.f32.mrf.mxu0
    %v2127 = vadd.f32 %v2038, %v2126
    %v2128 = vpop.f32.mrf.mxu0
    %v2129 = vadd.f32 %v2040, %v2128
    %2130 = vmatmul.bf16.gmra.mxu0 %v564
    %v2131 = vpop.f32.mrf.mxu0
    %v2132 = vadd.f32 %v2043, %v2131
    %v2133 = vpop.f32.mrf.mxu0
    %v2134 = vadd.f32 %v2045, %v2133
    %2135 = vmatmul.bf16.gmra.mxu0 %v566
    %v2136 = vpop.f32.mrf.mxu0
    %v2137 = vadd.f32 %v2048, %v2136
    %v2138 = vpop.f32.mrf.mxu0
    %v2139 = vadd.f32 %v2050, %v2138
    %2140 = vmatmul.bf16.gmra.mxu0 %v568
    %v2141 = vpop.f32.mrf.mxu0
    %v2142 = vadd.f32 %v2053, %v2141
    %v2143 = vpop.f32.mrf.mxu0
    %v2144 = vadd.f32 %v2055, %v2143
    %2145 = vmatmul.bf16.gmra.mxu0 %v570
    %v2146 = vpop.f32.mrf.mxu0
    %v2147 = vadd.f32 %v2058, %v2146
    %v2148 = vpop.f32.mrf.mxu0
    %v2149 = vadd.f32 %v2060, %v2148
    %2150 = vmatmul.bf16.gmra.mxu0 %v572
    %v2151 = vpop.f32.mrf.mxu0
    %v2152 = vadd.f32 %v2063, %v2151
    %v2153 = vpop.f32.mrf.mxu0
    %v2154 = vadd.f32 %v2065, %v2153
    %2155 = vmatmul.bf16.gmra.mxu0 %v574
    %v2156 = vpop.f32.mrf.mxu0
    %v2157 = vadd.f32 %v2068, %v2156
    %v2158 = vpop.f32.mrf.mxu0
    %v2159 = vadd.f32 %v2070, %v2158
    %2160 = vmatmul.bf16.gmra.mxu0 %v576
    %v2161 = vpop.f32.mrf.mxu0
    %v2162 = vadd.f32 %v2073, %v2161
    %v2163 = vpop.f32.mrf.mxu0
    %v2164 = vadd.f32 %v2075, %v2163
    %2165 = vmatmul.bf16.gmra.mxu0 %v578
    %v2166 = vpop.f32.mrf.mxu0
    %v2167 = vadd.f32 %v2078, %v2166
    %v2168 = vpop.f32.mrf.mxu0
    %v2169 = vadd.f32 %v2080, %v2168
    %2170 = vmatmul.bf16.gmra.mxu0 %v580
    %v2171 = vpop.f32.mrf.mxu0
    %v2172 = vadd.f32 %v2083, %v2171
    %v2173 = vpop.f32.mrf.mxu0
    %v2174 = vadd.f32 %v2085, %v2173
    %2175 = vmatmul.bf16.gmra.mxu0 %v582
    %v2176 = vpop.f32.mrf.mxu0
    %v2177 = vadd.f32 %v2088, %v2176
    %v2178 = vpop.f32.mrf.mxu0
    %v2179 = vadd.f32 %v2090, %v2178
    %2180 = vmatmul.bf16.gmra.mxu0 %v584
    %v2181 = vpop.f32.mrf.mxu0
    %v2182 = vadd.f32 %v2093, %v2181
    %v2183 = vpop.f32.mrf.mxu0
    %v2184 = vadd.f32 %v2095, %v2183
    %2185 = vmatmul.bf16.gmra.mxu0 %v586
    %v2186 = vpop.f32.mrf.mxu0
    %v2187 = vadd.f32 %v2098, %v2186
    %v2188 = vpop.f32.mrf.mxu0
    %v2189 = vadd.f32 %v2100, %v2188
    %2190 = vmatmul.bf16.gmra.mxu0 %v588
    %v2191 = vpop.f32.mrf.mxu0
    %v2192 = vadd.f32 %v2103, %v2191
    %v2193 = vpop.f32.mrf.mxu0
    %v2194 = vadd.f32 %v2105, %v2193
    %2195 = vmatmul.bf16.gmra.mxu0 %v590
    %v2196 = vpop.f32.mrf.mxu0
    %v2197 = vadd.f32 %v2108, %v2196
    %v2198 = vpop.f32.mrf.mxu0
    %v2199 = vadd.f32 %v2110, %v2198
    %2200 = vdwg.mxu0
    %2201 = vmatpush.bf16.msra.mxu0 %v1141
    %2202 = vmatpush.bf16.msra.mxu0 %v1134
    %2203 = vmatpush.bf16.msra.mxu0 %v1127
    %2204 = vmatpush.bf16.msra.mxu0 %v1120
    %2205 = vmatpush.bf16.msra.mxu0 %v1113
    %2206 = vmatpush.bf16.msra.mxu0 %v1106
    %2207 = vmatpush.bf16.msra.mxu0 %v1099
    %2208 = vmatpush.bf16.msra.mxu0 %v1092
    %2209 = vmatmul.bf16.gmra.mxu0 %v559
    %v2210 = vpop.f32.mrf.mxu0
    %v2211 = vadd.f32 %v726, %v2210
    %v2212 = vpop.f32.mrf.mxu0
    %v2213 = vadd.f32 %v726, %v2212
    %2214 = vmatmul.bf16.gmra.mxu0 %v561
    %v2215 = vpop.f32.mrf.mxu0
    %v2216 = vadd.f32 %v726, %v2215
    %v2217 = vpop.f32.mrf.mxu0
    %v2218 = vadd.f32 %v726, %v2217
    %2219 = vmatmul.bf16.gmra.mxu0 %v563
    %v2220 = vpop.f32.mrf.mxu0
    %v2221 = vadd.f32 %v726, %v2220
    %v2222 = vpop.f32.mrf.mxu0
    %v2223 = vadd.f32 %v726, %v2222
    %2224 = vmatmul.bf16.gmra.mxu0 %v565
    %v2225 = vpop.f32.mrf.mxu0
    %v2226 = vadd.f32 %v726, %v2225
    %v2227 = vpop.f32.mrf.mxu0
    %v2228 = vadd.f32 %v726, %v2227
    %2229 = vmatmul.bf16.gmra.mxu0 %v567
    %v2230 = vpop.f32.mrf.mxu0
    %v2231 = vadd.f32 %v726, %v2230
    %v2232 = vpop.f32.mrf.mxu0
    %v2233 = vadd.f32 %v726, %v2232
    %2234 = vmatmul.bf16.gmra.mxu0 %v569
    %v2235 = vpop.f32.mrf.mxu0
    %v2236 = vadd.f32 %v726, %v2235
    %v2237 = vpop.f32.mrf.mxu0
    %v2238 = vadd.f32 %v726, %v2237
    %2239 = vmatmul.bf16.gmra.mxu0 %v571
    %v2240 = vpop.f32.mrf.mxu0
    %v2241 = vadd.f32 %v726, %v2240
    %v2242 = vpop.f32.mrf.mxu0
    %v2243 = vadd.f32 %v726, %v2242
    %2244 = vmatmul.bf16.gmra.mxu0 %v573
    %v2245 = vpop.f32.mrf.mxu0
    %v2246 = vadd.f32 %v726, %v2245
    %v2247 = vpop.f32.mrf.mxu0
    %v2248 = vadd.f32 %v726, %v2247
    %2249 = vmatmul.bf16.gmra.mxu0 %v575
    %v2250 = vpop.f32.mrf.mxu0
    %v2251 = vadd.f32 %v726, %v2250
    %v2252 = vpop.f32.mrf.mxu0
    %v2253 = vadd.f32 %v726, %v2252
    %2254 = vmatmul.bf16.gmra.mxu0 %v577
    %v2255 = vpop.f32.mrf.mxu0
    %v2256 = vadd.f32 %v726, %v2255
    %v2257 = vpop.f32.mrf.mxu0
    %v2258 = vadd.f32 %v726, %v2257
    %2259 = vmatmul.bf16.gmra.mxu0 %v579
    %v2260 = vpop.f32.mrf.mxu0
    %v2261 = vadd.f32 %v726, %v2260
    %v2262 = vpop.f32.mrf.mxu0
    %v2263 = vadd.f32 %v726, %v2262
    %2264 = vmatmul.bf16.gmra.mxu0 %v581
    %v2265 = vpop.f32.mrf.mxu0
    %v2266 = vadd.f32 %v726, %v2265
    %v2267 = vpop.f32.mrf.mxu0
    %v2268 = vadd.f32 %v726, %v2267
    %2269 = vmatmul.bf16.gmra.mxu0 %v583
    %v2270 = vpop.f32.mrf.mxu0
    %v2271 = vadd.f32 %v726, %v2270
    %v2272 = vpop.f32.mrf.mxu0
    %v2273 = vadd.f32 %v726, %v2272
    %2274 = vmatmul.bf16.gmra.mxu0 %v585
    %v2275 = vpop.f32.mrf.mxu0
    %v2276 = vadd.f32 %v726, %v2275
    %v2277 = vpop.f32.mrf.mxu0
    %v2278 = vadd.f32 %v726, %v2277
    %2279 = vmatmul.bf16.gmra.mxu0 %v587
    %v2280 = vpop.f32.mrf.mxu0
    %v2281 = vadd.f32 %v726, %v2280
    %v2282 = vpop.f32.mrf.mxu0
    %v2283 = vadd.f32 %v726, %v2282
    %2284 = vmatmul.bf16.gmra.mxu0 %v589
    %v2285 = vpop.f32.mrf.mxu0
    %v2286 = vadd.f32 %v726, %v2285
    %v2287 = vpop.f32.mrf.mxu0
    %v2288 = vadd.f32 %v726, %v2287
    %2289 = vdwg.mxu0
    %2290 = vmatpush.bf16.msra.mxu0 %v1197
    %2291 = vmatpush.bf16.msra.mxu0 %v1190
    %2292 = vmatpush.bf16.msra.mxu0 %v1183
    %2293 = vmatpush.bf16.msra.mxu0 %v1176
    %2294 = vmatpush.bf16.msra.mxu0 %v1169
    %2295 = vmatpush.bf16.msra.mxu0 %v1162
    %2296 = vmatpush.bf16.msra.mxu0 %v1155
    %2297 = vmatpush.bf16.msra.mxu0 %v1148
    %2298 = vmatmul.bf16.gmra.mxu0 %v560
    %v2299 = vpop.f32.mrf.mxu0
    %v2300 = vadd.f32 %v2211, %v2299
    %v2301 = vpop.f32.mrf.mxu0
    %v2302 = vadd.f32 %v2213, %v2301
    %2303 = vmatmul.bf16.gmra.mxu0 %v562
    %v2304 = vpop.f32.mrf.mxu0
    %v2305 = vadd.f32 %v2216, %v2304
    %v2306 = vpop.f32.mrf.mxu0
    %v2307 = vadd.f32 %v2218, %v2306
    %2308 = vmatmul.bf16.gmra.mxu0 %v564
    %v2309 = vpop.f32.mrf.mxu0
    %v2310 = vadd.f32 %v2221, %v2309
    %v2311 = vpop.f32.mrf.mxu0
    %v2312 = vadd.f32 %v2223, %v2311
    %2313 = vmatmul.bf16.gmra.mxu0 %v566
    %v2314 = vpop.f32.mrf.mxu0
    %v2315 = vadd.f32 %v2226, %v2314
    %v2316 = vpop.f32.mrf.mxu0
    %v2317 = vadd.f32 %v2228, %v2316
    %2318 = vmatmul.bf16.gmra.mxu0 %v568
    %v2319 = vpop.f32.mrf.mxu0
    %v2320 = vadd.f32 %v2231, %v2319
    %v2321 = vpop.f32.mrf.mxu0
    %v2322 = vadd.f32 %v2233, %v2321
    %2323 = vmatmul.bf16.gmra.mxu0 %v570
    %v2324 = vpop.f32.mrf.mxu0
    %v2325 = vadd.f32 %v2236, %v2324
    %v2326 = vpop.f32.mrf.mxu0
    %v2327 = vadd.f32 %v2238, %v2326
    %2328 = vmatmul.bf16.gmra.mxu0 %v572
    %v2329 = vpop.f32.mrf.mxu0
    %v2330 = vadd.f32 %v2241, %v2329
    %v2331 = vpop.f32.mrf.mxu0
    %v2332 = vadd.f32 %v2243, %v2331
    %2333 = vmatmul.bf16.gmra.mxu0 %v574
    %v2334 = vpop.f32.mrf.mxu0
    %v2335 = vadd.f32 %v2246, %v2334
    %v2336 = vpop.f32.mrf.mxu0
    %v2337 = vadd.f32 %v2248, %v2336
    %2338 = vmatmul.bf16.gmra.mxu0 %v576
    %v2339 = vpop.f32.mrf.mxu0
    %v2340 = vadd.f32 %v2251, %v2339
    %v2341 = vpop.f32.mrf.mxu0
    %v2342 = vadd.f32 %v2253, %v2341
    %2343 = vmatmul.bf16.gmra.mxu0 %v578
    %v2344 = vpop.f32.mrf.mxu0
    %v2345 = vadd.f32 %v2256, %v2344
    %v2346 = vpop.f32.mrf.mxu0
    %v2347 = vadd.f32 %v2258, %v2346
    %2348 = vmatmul.bf16.gmra.mxu0 %v580
    %v2349 = vpop.f32.mrf.mxu0
    %v2350 = vadd.f32 %v2261, %v2349
    %v2351 = vpop.f32.mrf.mxu0
    %v2352 = vadd.f32 %v2263, %v2351
    %2353 = vmatmul.bf16.gmra.mxu0 %v582
    %v2354 = vpop.f32.mrf.mxu0
    %v2355 = vadd.f32 %v2266, %v2354
    %v2356 = vpop.f32.mrf.mxu0
    %v2357 = vadd.f32 %v2268, %v2356
    %2358 = vmatmul.bf16.gmra.mxu0 %v584
    %v2359 = vpop.f32.mrf.mxu0
    %v2360 = vadd.f32 %v2271, %v2359
    %v2361 = vpop.f32.mrf.mxu0
    %v2362 = vadd.f32 %v2273, %v2361
    %2363 = vmatmul.bf16.gmra.mxu0 %v586
    %v2364 = vpop.f32.mrf.mxu0
    %v2365 = vadd.f32 %v2276, %v2364
    %v2366 = vpop.f32.mrf.mxu0
    %v2367 = vadd.f32 %v2278, %v2366
    %2368 = vmatmul.bf16.gmra.mxu0 %v588
    %v2369 = vpop.f32.mrf.mxu0
    %v2370 = vadd.f32 %v2281, %v2369
    %v2371 = vpop.f32.mrf.mxu0
    %v2372 = vadd.f32 %v2283, %v2371
    %2373 = vmatmul.bf16.gmra.mxu0 %v590
    %v2374 = vpop.f32.mrf.mxu0
    %v2375 = vadd.f32 %v2286, %v2374
    %v2376 = vpop.f32.mrf.mxu0
    %v2377 = vadd.f32 %v2288, %v2376
    %2378 = vdwg.mxu0
    %2379 = vmatpush.bf16.msra.mxu0 %v1142
    %2380 = vmatpush.bf16.msra.mxu0 %v1135
    %2381 = vmatpush.bf16.msra.mxu0 %v1128
    %2382 = vmatpush.bf16.msra.mxu0 %v1121
    %2383 = vmatpush.bf16.msra.mxu0 %v1114
    %2384 = vmatpush.bf16.msra.mxu0 %v1107
    %2385 = vmatpush.bf16.msra.mxu0 %v1100
    %2386 = vmatpush.bf16.msra.mxu0 %v1093
    %2387 = vmatmul.bf16.gmra.mxu0 %v559
    %v2388 = vpop.f32.mrf.mxu0
    %v2389 = vadd.f32 %v727, %v2388
    %v2390 = vpop.f32.mrf.mxu0
    %v2391 = vadd.f32 %v727, %v2390
    %2392 = vmatmul.bf16.gmra.mxu0 %v561
    %v2393 = vpop.f32.mrf.mxu0
    %v2394 = vadd.f32 %v727, %v2393
    %v2395 = vpop.f32.mrf.mxu0
    %v2396 = vadd.f32 %v727, %v2395
    %2397 = vmatmul.bf16.gmra.mxu0 %v563
    %v2398 = vpop.f32.mrf.mxu0
    %v2399 = vadd.f32 %v727, %v2398
    %v2400 = vpop.f32.mrf.mxu0
    %v2401 = vadd.f32 %v727, %v2400
    %2402 = vmatmul.bf16.gmra.mxu0 %v565
    %v2403 = vpop.f32.mrf.mxu0
    %v2404 = vadd.f32 %v727, %v2403
    %v2405 = vpop.f32.mrf.mxu0
    %v2406 = vadd.f32 %v727, %v2405
    %2407 = vmatmul.bf16.gmra.mxu0 %v567
    %v2408 = vpop.f32.mrf.mxu0
    %v2409 = vadd.f32 %v727, %v2408
    %v2410 = vpop.f32.mrf.mxu0
    %v2411 = vadd.f32 %v727, %v2410
    %2412 = vmatmul.bf16.gmra.mxu0 %v569
    %v2413 = vpop.f32.mrf.mxu0
    %v2414 = vadd.f32 %v727, %v2413
    %v2415 = vpop.f32.mrf.mxu0
    %v2416 = vadd.f32 %v727, %v2415
    %2417 = vmatmul.bf16.gmra.mxu0 %v571
    %v2418 = vpop.f32.mrf.mxu0
    %v2419 = vadd.f32 %v727, %v2418
    %v2420 = vpop.f32.mrf.mxu0
    %v2421 = vadd.f32 %v727, %v2420
    %2422 = vmatmul.bf16.gmra.mxu0 %v573
    %v2423 = vpop.f32.mrf.mxu0
    %v2424 = vadd.f32 %v727, %v2423
    %v2425 = vpop.f32.mrf.mxu0
    %v2426 = vadd.f32 %v727, %v2425
    %2427 = vmatmul.bf16.gmra.mxu0 %v575
    %v2428 = vpop.f32.mrf.mxu0
    %v2429 = vadd.f32 %v727, %v2428
    %v2430 = vpop.f32.mrf.mxu0
    %v2431 = vadd.f32 %v727, %v2430
    %2432 = vmatmul.bf16.gmra.mxu0 %v577
    %v2433 = vpop.f32.mrf.mxu0
    %v2434 = vadd.f32 %v727, %v2433
    %v2435 = vpop.f32.mrf.mxu0
    %v2436 = vadd.f32 %v727, %v2435
    %2437 = vmatmul.bf16.gmra.mxu0 %v579
    %v2438 = vpop.f32.mrf.mxu0
    %v2439 = vadd.f32 %v727, %v2438
    %v2440 = vpop.f32.mrf.mxu0
    %v2441 = vadd.f32 %v727, %v2440
    %2442 = vmatmul.bf16.gmra.mxu0 %v581
    %v2443 = vpop.f32.mrf.mxu0
    %v2444 = vadd.f32 %v727, %v2443
    %v2445 = vpop.f32.mrf.mxu0
    %v2446 = vadd.f32 %v727, %v2445
    %2447 = vmatmul.bf16.gmra.mxu0 %v583
    %v2448 = vpop.f32.mrf.mxu0
    %v2449 = vadd.f32 %v727, %v2448
    %v2450 = vpop.f32.mrf.mxu0
    %v2451 = vadd.f32 %v727, %v2450
    %2452 = vmatmul.bf16.gmra.mxu0 %v585
    %v2453 = vpop.f32.mrf.mxu0
    %v2454 = vadd.f32 %v727, %v2453
    %v2455 = vpop.f32.mrf.mxu0
    %v2456 = vadd.f32 %v727, %v2455
    %2457 = vmatmul.bf16.gmra.mxu0 %v587
    %v2458 = vpop.f32.mrf.mxu0
    %v2459 = vadd.f32 %v727, %v2458
    %v2460 = vpop.f32.mrf.mxu0
    %v2461 = vadd.f32 %v727, %v2460
    %2462 = vmatmul.bf16.gmra.mxu0 %v589
    %v2463 = vpop.f32.mrf.mxu0
    %v2464 = vadd.f32 %v727, %v2463
    %v2465 = vpop.f32.mrf.mxu0
    %v2466 = vadd.f32 %v727, %v2465
    %2467 = vdwg.mxu0
    %2468 = vmatpush.bf16.msra.mxu0 %v1198
    %2469 = vmatpush.bf16.msra.mxu0 %v1191
    %2470 = vmatpush.bf16.msra.mxu0 %v1184
    %2471 = vmatpush.bf16.msra.mxu0 %v1177
    %2472 = vmatpush.bf16.msra.mxu0 %v1170
    %2473 = vmatpush.bf16.msra.mxu0 %v1163
    %2474 = vmatpush.bf16.msra.mxu0 %v1156
    %2475 = vmatpush.bf16.msra.mxu0 %v1149
    %2476 = vmatmul.bf16.gmra.mxu0 %v560
    %v2477 = vpop.f32.mrf.mxu0
    %v2478 = vadd.f32 %v2389, %v2477
    %v2479 = vpop.f32.mrf.mxu0
    %v2480 = vadd.f32 %v2391, %v2479
    %2481 = vmatmul.bf16.gmra.mxu0 %v562
    %v2482 = vpop.f32.mrf.mxu0
    %v2483 = vadd.f32 %v2394, %v2482
    %v2484 = vpop.f32.mrf.mxu0
    %v2485 = vadd.f32 %v2396, %v2484
    %2486 = vmatmul.bf16.gmra.mxu0 %v564
    %v2487 = vpop.f32.mrf.mxu0
    %v2488 = vadd.f32 %v2399, %v2487
    %v2489 = vpop.f32.mrf.mxu0
    %v2490 = vadd.f32 %v2401, %v2489
    %2491 = vmatmul.bf16.gmra.mxu0 %v566
    %v2492 = vpop.f32.mrf.mxu0
    %v2493 = vadd.f32 %v2404, %v2492
    %v2494 = vpop.f32.mrf.mxu0
    %v2495 = vadd.f32 %v2406, %v2494
    %2496 = vmatmul.bf16.gmra.mxu0 %v568
    %v2497 = vpop.f32.mrf.mxu0
    %v2498 = vadd.f32 %v2409, %v2497
    %v2499 = vpop.f32.mrf.mxu0
    %v2500 = vadd.f32 %v2411, %v2499
    %2501 = vmatmul.bf16.gmra.mxu0 %v570
    %v2502 = vpop.f32.mrf.mxu0
    %v2503 = vadd.f32 %v2414, %v2502
    %v2504 = vpop.f32.mrf.mxu0
    %v2505 = vadd.f32 %v2416, %v2504
    %2506 = vmatmul.bf16.gmra.mxu0 %v572
    %v2507 = vpop.f32.mrf.mxu0
    %v2508 = vadd.f32 %v2419, %v2507
    %v2509 = vpop.f32.mrf.mxu0
    %v2510 = vadd.f32 %v2421, %v2509
    %2511 = vmatmul.bf16.gmra.mxu0 %v574
    %v2512 = vpop.f32.mrf.mxu0
    %v2513 = vadd.f32 %v2424, %v2512
    %v2514 = vpop.f32.mrf.mxu0
    %v2515 = vadd.f32 %v2426, %v2514
    %2516 = vmatmul.bf16.gmra.mxu0 %v576
    %v2517 = vpop.f32.mrf.mxu0
    %v2518 = vadd.f32 %v2429, %v2517
    %v2519 = vpop.f32.mrf.mxu0
    %v2520 = vadd.f32 %v2431, %v2519
    %2521 = vmatmul.bf16.gmra.mxu0 %v578
    %v2522 = vpop.f32.mrf.mxu0
    %v2523 = vadd.f32 %v2434, %v2522
    %v2524 = vpop.f32.mrf.mxu0
    %v2525 = vadd.f32 %v2436, %v2524
    %2526 = vmatmul.bf16.gmra.mxu0 %v580
    %v2527 = vpop.f32.mrf.mxu0
    %v2528 = vadd.f32 %v2439, %v2527
    %v2529 = vpop.f32.mrf.mxu0
    %v2530 = vadd.f32 %v2441, %v2529
    %2531 = vmatmul.bf16.gmra.mxu0 %v582
    %v2532 = vpop.f32.mrf.mxu0
    %v2533 = vadd.f32 %v2444, %v2532
    %v2534 = vpop.f32.mrf.mxu0
    %v2535 = vadd.f32 %v2446, %v2534
    %2536 = vmatmul.bf16.gmra.mxu0 %v584
    %v2537 = vpop.f32.mrf.mxu0
    %v2538 = vadd.f32 %v2449, %v2537
    %v2539 = vpop.f32.mrf.mxu0
    %v2540 = vadd.f32 %v2451, %v2539
    %2541 = vmatmul.bf16.gmra.mxu0 %v586
    %v2542 = vpop.f32.mrf.mxu0
    %v2543 = vadd.f32 %v2454, %v2542
    %v2544 = vpop.f32.mrf.mxu0
    %v2545 = vadd.f32 %v2456, %v2544
    %2546 = vmatmul.bf16.gmra.mxu0 %v588
    %v2547 = vpop.f32.mrf.mxu0
    %v2548 = vadd.f32 %v2459, %v2547
    %v2549 = vpop.f32.mrf.mxu0
    %v2550 = vadd.f32 %v2461, %v2549
    %2551 = vmatmul.bf16.gmra.mxu0 %v590
    %v2552 = vpop.f32.mrf.mxu0
    %v2553 = vadd.f32 %v2464, %v2552
    %v2554 = vpop.f32.mrf.mxu0
    %v2555 = vadd.f32 %v2466, %v2554
    %2556 = vdwg.mxu0
    %v2557 = vtanh.pop %v1410
    %v2558 = vtanh.pop %v1588
    %v2559 = vtanh.pop %v1766
    %v2560 = vtanh.pop %v1944
    %v2561 = vtanh.pop %v2122
    %v2562 = vtanh.pop %v2300
    %v2563 = vtanh.pop %v2478
    %v2564 = vtanh.pop %v1412
    %v2565 = vtanh.pop %v1590
    %v2566 = vtanh.pop %v1768
    %v2567 = vtanh.pop %v1946
    %v2568 = vtanh.pop %v2124
    %v2569 = vtanh.pop %v2302
    %v2570 = vtanh.pop %v2480
    %v2571 = vtanh.pop %v1415
    %v2572 = vtanh.pop %v1593
    %v2573 = vtanh.pop %v1771
    %v2574 = vtanh.pop %v1949
    %v2575 = vtanh.pop %v2127
    %v2576 = vtanh.pop %v2305
    %v2577 = vtanh.pop %v2483
    %v2578 = vtanh.pop %v1417
    %v2579 = vtanh.pop %v1595
    %v2580 = vtanh.pop %v1773
    %v2581 = vtanh.pop %v1951
    %v2582 = vtanh.pop %v2129
    %v2583 = vtanh.pop %v2307
    %v2584 = vtanh.pop %v2485
    %v2585 = vtanh.pop %v1420
    %v2586 = vtanh.pop %v1598
    %v2587 = vtanh.pop %v1776
    %v2588 = vtanh.pop %v1954
    %v2589 = vtanh.pop %v2132
    %v2590 = vtanh.pop %v2310
    %v2591 = vtanh.pop %v2488
    %v2592 = vtanh.pop %v1422
    %v2593 = vtanh.pop %v1600
    %v2594 = vtanh.pop %v1778
    %v2595 = vtanh.pop %v1956
    %v2596 = vtanh.pop %v2134
    %v2597 = vtanh.pop %v2312
    %v2598 = vtanh.pop %v2490
    %v2599 = vtanh.pop %v1425
    %v2600 = vtanh.pop %v1603
    %v2601 = vtanh.pop %v1781
    %v2602 = vtanh.pop %v1959
    %v2603 = vtanh.pop %v2137
    %v2604 = vtanh.pop %v2315
    %v2605 = vtanh.pop %v2493
    %v2606 = vtanh.pop %v1427
    %v2607 = vtanh.pop %v1605
    %v2608 = vtanh.pop %v1783
    %v2609 = vtanh.pop %v1961
    %v2610 = vtanh.pop %v2139
    %v2611 = vtanh.pop %v2317
    %v2612 = vtanh.pop %v2495
    %v2613 = vtanh.pop %v1430
    %v2614 = vtanh.pop %v1608
    %v2615 = vtanh.pop %v1786
    %v2616 = vtanh.pop %v1964
    %v2617 = vtanh.pop %v2142
    %v2618 = vtanh.pop %v2320
    %v2619 = vtanh.pop %v2498
    %v2620 = vtanh.pop %v1432
    %v2621 = vtanh.pop %v1610
    %v2622 = vtanh.pop %v1788
    %v2623 = vtanh.pop %v1966
    %v2624 = vtanh.pop %v2144
    %v2625 = vtanh.pop %v2322
    %v2626 = vtanh.pop %v2500
    %v2627 = vtanh.pop %v1435
    %v2628 = vtanh.pop %v1613
    %v2629 = vtanh.pop %v1791
    %v2630 = vtanh.pop %v1969
    %v2631 = vtanh.pop %v2147
    %v2632 = vtanh.pop %v2325
    %v2633 = vtanh.pop %v2503
    %v2634 = vtanh.pop %v1437
    %v2635 = vtanh.pop %v1615
    %v2636 = vtanh.pop %v1793
    %v2637 = vtanh.pop %v1971
    %v2638 = vtanh.pop %v2149
    %v2639 = vtanh.pop %v2327
    %v2640 = vtanh.pop %v2505
    %v2641 = vtanh.pop %v1440
    %v2642 = vtanh.pop %v1618
    %v2643 = vtanh.pop %v1796
    %v2644 = vtanh.pop %v1974
    %v2645 = vtanh.pop %v2152
    %v2646 = vtanh.pop %v2330
    %v2647 = vtanh.pop %v2508
    %v2648 = vtanh.pop %v1442
    %v2649 = vtanh.pop %v1620
    %v2650 = vtanh.pop %v1798
    %v2651 = vtanh.pop %v1976
    %v2652 = vtanh.pop %v2154
    %v2653 = vtanh.pop %v2332
    %v2654 = vtanh.pop %v2510
    %v2655 = vtanh.pop %v1445
    %v2656 = vtanh.pop %v1623
    %v2657 = vtanh.pop %v1801
    %v2658 = vtanh.pop %v1979
    %v2659 = vtanh.pop %v2157
    %v2660 = vtanh.pop %v2335
    %v2661 = vtanh.pop %v2513
    %v2662 = vtanh.pop %v1447
    %v2663 = vtanh.pop %v1625
    %v2664 = vtanh.pop %v1803
    %v2665 = vtanh.pop %v1981
    %v2666 = vtanh.pop %v2159
    %v2667 = vtanh.pop %v2337
    %v2668 = vtanh.pop %v2515
    %v2669 = vtanh.pop %v1450
    %v2670 = vtanh.pop %v1628
    %v2671 = vtanh.pop %v1806
    %v2672 = vtanh.pop %v1984
    %v2673 = vtanh.pop %v2162
    %v2674 = vtanh.pop %v2340
    %v2675 = vtanh.pop %v2518
    %v2676 = vtanh.pop %v1452
    %v2677 = vtanh.pop %v1630
    %v2678 = vtanh.pop %v1808
    %v2679 = vtanh.pop %v1986
    %v2680 = vtanh.pop %v2164
    %v2681 = vtanh.pop %v2342
    %v2682 = vtanh.pop %v2520
    %v2683 = vtanh.pop %v1455
    %v2684 = vtanh.pop %v1633
    %v2685 = vtanh.pop %v1811
    %v2686 = vtanh.pop %v1989
    %v2687 = vtanh.pop %v2167
    %v2688 = vtanh.pop %v2345
    %v2689 = vtanh.pop %v2523
    %v2690 = vtanh.pop %v1457
    %v2691 = vtanh.pop %v1635
    %v2692 = vtanh.pop %v1813
    %v2693 = vtanh.pop %v1991
    %v2694 = vtanh.pop %v2169
    %v2695 = vtanh.pop %v2347
    %v2696 = vtanh.pop %v2525
    %v2697 = vtanh.pop %v1460
    %v2698 = vtanh.pop %v1638
    %v2699 = vtanh.pop %v1816
    %v2700 = vtanh.pop %v1994
    %v2701 = vtanh.pop %v2172
    %v2702 = vtanh.pop %v2350
    %v2703 = vtanh.pop %v2528
    %v2704 = vtanh.pop %v1462
    %v2705 = vtanh.pop %v1640
    %v2706 = vtanh.pop %v1818
    %v2707 = vtanh.pop %v1996
    %v2708 = vtanh.pop %v2174
    %v2709 = vtanh.pop %v2352
    %v2710 = vtanh.pop %v2530
    %v2711 = vtanh.pop %v1465
    %v2712 = vtanh.pop %v1643
    %v2713 = vtanh.pop %v1821
    %v2714 = vtanh.pop %v1999
    %v2715 = vtanh.pop %v2177
    %v2716 = vtanh.pop %v2355
    %v2717 = vtanh.pop %v2533
    %v2718 = vtanh.pop %v1467
    %v2719 = vtanh.pop %v1645
    %v2720 = vtanh.pop %v1823
    %v2721 = vtanh.pop %v2001
    %v2722 = vtanh.pop %v2179
    %v2723 = vtanh.pop %v2357
    %v2724 = vtanh.pop %v2535
    %v2725 = vtanh.pop %v1470
    %v2726 = vtanh.pop %v1648
    %v2727 = vtanh.pop %v1826
    %v2728 = vtanh.pop %v2004
    %v2729 = vtanh.pop %v2182
    %v2730 = vtanh.pop %v2360
    %v2731 = vtanh.pop %v2538
    %v2732 = vtanh.pop %v1472
    %v2733 = vtanh.pop %v1650
    %v2734 = vtanh.pop %v1828
    %v2735 = vtanh.pop %v2006
    %v2736 = vtanh.pop %v2184
    %v2737 = vtanh.pop %v2362
    %v2738 = vtanh.pop %v2540
    %v2739 = vtanh.pop %v1475
    %v2740 = vtanh.pop %v1653
    %v2741 = vtanh.pop %v1831
    %v2742 = vtanh.pop %v2009
    %v2743 = vtanh.pop %v2187
    %v2744 = vtanh.pop %v2365
    %v2745 = vtanh.pop %v2543
    %v2746 = vtanh.pop %v1477
    %v2747 = vtanh.pop %v1655
    %v2748 = vtanh.pop %v1833
    %v2749 = vtanh.pop %v2011
    %v2750 = vtanh.pop %v2189
    %v2751 = vtanh.pop %v2367
    %v2752 = vtanh.pop %v2545
    %v2753 = vtanh.pop %v1480
    %v2754 = vtanh.pop %v1658
    %v2755 = vtanh.pop %v1836
    %v2756 = vtanh.pop %v2014
    %v2757 = vtanh.pop %v2192
    %v2758 = vtanh.pop %v2370
    %v2759 = vtanh.pop %v2548
    %v2760 = vtanh.pop %v1482
    %v2761 = vtanh.pop %v1660
    %v2762 = vtanh.pop %v1838
    %v2763 = vtanh.pop %v2016
    %v2764 = vtanh.pop %v2194
    %v2765 = vtanh.pop %v2372
    %v2766 = vtanh.pop %v2550
    %v2767 = vtanh.pop %v1485
    %v2768 = vtanh.pop %v1663
    %v2769 = vtanh.pop %v1841
    %v2770 = vtanh.pop %v2019
    %v2771 = vtanh.pop %v2197
    %v2772 = vtanh.pop %v2375
    %v2773 = vtanh.pop %v2553
    %v2774 = vtanh.pop %v1487
    %v2775 = vtanh.pop %v1665
    %v2776 = vtanh.pop %v1843
    %v2777 = vtanh.pop %v2021
    %v2778 = vtanh.pop %v2199
    %v2779 = vtanh.pop %v2377
    %v2780 = vtanh.pop %v2555
    %2781 = vst [vmem:[#allocation5] sm:$0xff] %v2557
    %2782 = vst [vmem:[#allocation5 + $0x8] sm:$0xff] %v2558
    %2783 = vst [vmem:[#allocation5 + $0x10] sm:$0xff] %v2559
    %2784 = vst [vmem:[#allocation5 + $0x18] sm:$0xff] %v2560
    %2785 = vst [vmem:[#allocation5 + $0x20] sm:$0xff] %v2561
    %2786 = vst [vmem:[#allocation5 + $0x28] sm:$0xff] %v2562
    %2787 = vst [vmem:[#allocation5 + $0x30] sm:$0xff] %v2563
    %2788 = vst [vmem:[#allocation5 + $0x38] sm:$0xff] %v2564
    %2789 = vst [vmem:[#allocation5 + $0x40] sm:$0xff] %v2565
    %2790 = vst [vmem:[#allocation5 + $0x48] sm:$0xff] %v2566
    %2791 = vst [vmem:[#allocation5 + $0x50] sm:$0xff] %v2567
    %2792 = vst [vmem:[#allocation5 + $0x58] sm:$0xff] %v2568
    %2793 = vst [vmem:[#allocation5 + $0x60] sm:$0xff] %v2569
    %2794 = vst [vmem:[#allocation5 + $0x68] sm:$0xff] %v2570
    %2795 = vst [vmem:[#allocation5 + $0x70] sm:$0xff] %v2571
    %2796 = vst [vmem:[#allocation5 + $0x78] sm:$0xff] %v2572
    %2797 = vst [vmem:[#allocation5 + $0x80] sm:$0xff] %v2573
    %2798 = vst [vmem:[#allocation5 + $0x88] sm:$0xff] %v2574
    %2799 = vst [vmem:[#allocation5 + $0x90] sm:$0xff] %v2575
    %2800 = vst [vmem:[#allocation5 + $0x98] sm:$0xff] %v2576
    %2801 = vst [vmem:[#allocation5 + $0xa0] sm:$0xff] %v2577
    %2802 = vst [vmem:[#allocation5 + $0xa8] sm:$0xff] %v2578
    %2803 = vst [vmem:[#allocation5 + $0xb0] sm:$0xff] %v2579
    %2804 = vst [vmem:[#allocation5 + $0xb8] sm:$0xff] %v2580
    %2805 = vst [vmem:[#allocation5 + $0xc0] sm:$0xff] %v2581
    %2806 = vst [vmem:[#allocation5 + $0xc8] sm:$0xff] %v2582
    %2807 = vst [vmem:[#allocation5 + $0xd0] sm:$0xff] %v2583
    %2808 = vst [vmem:[#allocation5 + $0xd8] sm:$0xff] %v2584
    %2809 = vst [vmem:[#allocation5 + $0xe0] sm:$0xff] %v2585
    %2810 = vst [vmem:[#allocation5 + $0xe8] sm:$0xff] %v2586
    %2811 = vst [vmem:[#allocation5 + $0xf0] sm:$0xff] %v2587
    %2812 = vst [vmem:[#allocation5 + $0xf8] sm:$0xff] %v2588
    %2813 = vst [vmem:[#allocation5 + $0x100] sm:$0xff] %v2589
    %2814 = vst [vmem:[#allocation5 + $0x108] sm:$0xff] %v2590
    %2815 = vst [vmem:[#allocation5 + $0x110] sm:$0xff] %v2591
    %2816 = vst [vmem:[#allocation5 + $0x118] sm:$0xff] %v2592
    %2817 = vst [vmem:[#allocation5 + $0x120] sm:$0xff] %v2593
    %2818 = vst [vmem:[#allocation5 + $0x128] sm:$0xff] %v2594
    %2819 = vst [vmem:[#allocation5 + $0x130] sm:$0xff] %v2595
    %2820 = vst [vmem:[#allocation5 + $0x138] sm:$0xff] %v2596
    %2821 = vst [vmem:[#allocation5 + $0x140] sm:$0xff] %v2597
    %2822 = vst [vmem:[#allocation5 + $0x148] sm:$0xff] %v2598
    %2823 = vst [vmem:[#allocation5 + $0x150] sm:$0xff] %v2599
    %2824 = vst [vmem:[#allocation5 + $0x158] sm:$0xff] %v2600
    %2825 = vst [vmem:[#allocation5 + $0x160] sm:$0xff] %v2601
    %2826 = vst [vmem:[#allocation5 + $0x168] sm:$0xff] %v2602
    %2827 = vst [vmem:[#allocation5 + $0x170] sm:$0xff] %v2603
    %2828 = vst [vmem:[#allocation5 + $0x178] sm:$0xff] %v2604
    %2829 = vst [vmem:[#allocation5 + $0x180] sm:$0xff] %v2605
    %2830 = vst [vmem:[#allocation5 + $0x188] sm:$0xff] %v2606
    %2831 = vst [vmem:[#allocation5 + $0x190] sm:$0xff] %v2607
    %2832 = vst [vmem:[#allocation5 + $0x198] sm:$0xff] %v2608
    %2833 = vst [vmem:[#allocation5 + $0x1a0] sm:$0xff] %v2609
    %2834 = vst [vmem:[#allocation5 + $0x1a8] sm:$0xff] %v2610
    %2835 = vst [vmem:[#allocation5 + $0x1b0] sm:$0xff] %v2611
    %2836 = vst [vmem:[#allocation5 + $0x1b8] sm:$0xff] %v2612
    %2837 = vst [vmem:[#allocation5 + $0x1c0] sm:$0xff] %v2613
    %2838 = vst [vmem:[#allocation5 + $0x1c8] sm:$0xff] %v2614
    %2839 = vst [vmem:[#allocation5 + $0x1d0] sm:$0xff] %v2615
    %2840 = vst [vmem:[#allocation5 + $0x1d8] sm:$0xff] %v2616
    %2841 = vst [vmem:[#allocation5 + $0x1e0] sm:$0xff] %v2617
    %2842 = vst [vmem:[#allocation5 + $0x1e8] sm:$0xff] %v2618
    %2843 = vst [vmem:[#allocation5 + $0x1f0] sm:$0xff] %v2619
    %2844 = vst [vmem:[#allocation5 + $0x1f8] sm:$0xff] %v2620
    %2845 = vst [vmem:[#allocation5 + $0x200] sm:$0xff] %v2621
    %2846 = vst [vmem:[#allocation5 + $0x208] sm:$0xff] %v2622
    %2847 = vst [vmem:[#allocation5 + $0x210] sm:$0xff] %v2623
    %2848 = vst [vmem:[#allocation5 + $0x218] sm:$0xff] %v2624
    %2849 = vst [vmem:[#allocation5 + $0x220] sm:$0xff] %v2625
    %2850 = vst [vmem:[#allocation5 + $0x228] sm:$0xff] %v2626
    %2851 = vst [vmem:[#allocation5 + $0x230] sm:$0xff] %v2627
    %2852 = vst [vmem:[#allocation5 + $0x238] sm:$0xff] %v2628
    %2853 = vst [vmem:[#allocation5 + $0x240] sm:$0xff] %v2629
    %2854 = vst [vmem:[#allocation5 + $0x248] sm:$0xff] %v2630
    %2855 = vst [vmem:[#allocation5 + $0x250] sm:$0xff] %v2631
    %2856 = vst [vmem:[#allocation5 + $0x258] sm:$0xff] %v2632
    %2857 = vst [vmem:[#allocation5 + $0x260] sm:$0xff] %v2633
    %2858 = vst [vmem:[#allocation5 + $0x268] sm:$0xff] %v2634
    %2859 = vst [vmem:[#allocation5 + $0x270] sm:$0xff] %v2635
    %2860 = vst [vmem:[#allocation5 + $0x278] sm:$0xff] %v2636
    %2861 = vst [vmem:[#allocation5 + $0x280] sm:$0xff] %v2637
    %2862 = vst [vmem:[#allocation5 + $0x288] sm:$0xff] %v2638
    %2863 = vst [vmem:[#allocation5 + $0x290] sm:$0xff] %v2639
    %2864 = vst [vmem:[#allocation5 + $0x298] sm:$0xff] %v2640
    %2865 = vst [vmem:[#allocation5 + $0x2a0] sm:$0xff] %v2641
    %2866 = vst [vmem:[#allocation5 + $0x2a8] sm:$0xff] %v2642
    %2867 = vst [vmem:[#allocation5 + $0x2b0] sm:$0xff] %v2643
    %2868 = vst [vmem:[#allocation5 + $0x2b8] sm:$0xff] %v2644
    %2869 = vst [vmem:[#allocation5 + $0x2c0] sm:$0xff] %v2645
    %2870 = vst [vmem:[#allocation5 + $0x2c8] sm:$0xff] %v2646
    %2871 = vst [vmem:[#allocation5 + $0x2d0] sm:$0xff] %v2647
    %2872 = vst [vmem:[#allocation5 + $0x2d8] sm:$0xff] %v2648
    %2873 = vst [vmem:[#allocation5 + $0x2e0] sm:$0xff] %v2649
    %2874 = vst [vmem:[#allocation5 + $0x2e8] sm:$0xff] %v2650
    %2875 = vst [vmem:[#allocation5 + $0x2f0] sm:$0xff] %v2651
    %2876 = vst [vmem:[#allocation5 + $0x2f8] sm:$0xff] %v2652
    %2877 = vst [vmem:[#allocation5 + $0x300] sm:$0xff] %v2653
    %2878 = vst [vmem:[#allocation5 + $0x308] sm:$0xff] %v2654
    %2879 = vst [vmem:[#allocation5 + $0x310] sm:$0xff] %v2655
    %2880 = vst [vmem:[#allocation5 + $0x318] sm:$0xff] %v2656
    %2881 = vst [vmem:[#allocation5 + $0x320] sm:$0xff] %v2657
    %2882 = vst [vmem:[#allocation5 + $0x328] sm:$0xff] %v2658
    %2883 = vst [vmem:[#allocation5 + $0x330] sm:$0xff] %v2659
    %2884 = vst [vmem:[#allocation5 + $0x338] sm:$0xff] %v2660
    %2885 = vst [vmem:[#allocation5 + $0x340] sm:$0xff] %v2661
    %2886 = vst [vmem:[#allocation5 + $0x348] sm:$0xff] %v2662
    %2887 = vst [vmem:[#allocation5 + $0x350] sm:$0xff] %v2663
    %2888 = vst [vmem:[#allocation5 + $0x358] sm:$0xff] %v2664
    %2889 = vst [vmem:[#allocation5 + $0x360] sm:$0xff] %v2665
    %2890 = vst [vmem:[#allocation5 + $0x368] sm:$0xff] %v2666
    %2891 = vst [vmem:[#allocation5 + $0x370] sm:$0xff] %v2667
    %2892 = vst [vmem:[#allocation5 + $0x378] sm:$0xff] %v2668
    %2893 = vst [vmem:[#allocation5 + $0x380] sm:$0xff] %v2669
    %2894 = vst [vmem:[#allocation5 + $0x388] sm:$0xff] %v2670
    %2895 = vst [vmem:[#allocation5 + $0x390] sm:$0xff] %v2671
    %2896 = vst [vmem:[#allocation5 + $0x398] sm:$0xff] %v2672
    %2897 = vst [vmem:[#allocation5 + $0x3a0] sm:$0xff] %v2673
    %2898 = vst [vmem:[#allocation5 + $0x3a8] sm:$0xff] %v2674
    %2899 = vst [vmem:[#allocation5 + $0x3b0] sm:$0xff] %v2675
    %2900 = vst [vmem:[#allocation5 + $0x3b8] sm:$0xff] %v2676
    %2901 = vst [vmem:[#allocation5 + $0x3c0] sm:$0xff] %v2677
    %2902 = vst [vmem:[#allocation5 + $0x3c8] sm:$0xff] %v2678
    %2903 = vst [vmem:[#allocation5 + $0x3d0] sm:$0xff] %v2679
    %2904 = vst [vmem:[#allocation5 + $0x3d8] sm:$0xff] %v2680
    %2905 = vst [vmem:[#allocation5 + $0x3e0] sm:$0xff] %v2681
    %2906 = vst [vmem:[#allocation5 + $0x3e8] sm:$0xff] %v2682
    %2907 = vst [vmem:[#allocation5 + $0x3f0] sm:$0xff] %v2683
    %2908 = vst [vmem:[#allocation5 + $0x3f8] sm:$0xff] %v2684
    %2909 = vst [vmem:[#allocation5 + $0x400] sm:$0xff] %v2685
    %2910 = vst [vmem:[#allocation5 + $0x408] sm:$0xff] %v2686
    %2911 = vst [vmem:[#allocation5 + $0x410] sm:$0xff] %v2687
    %2912 = vst [vmem:[#allocation5 + $0x418] sm:$0xff] %v2688
    %2913 = vst [vmem:[#allocation5 + $0x420] sm:$0xff] %v2689
    %2914 = vst [vmem:[#allocation5 + $0x428] sm:$0xff] %v2690
    %2915 = vst [vmem:[#allocation5 + $0x430] sm:$0xff] %v2691
    %2916 = vst [vmem:[#allocation5 + $0x438] sm:$0xff] %v2692
    %2917 = vst [vmem:[#allocation5 + $0x440] sm:$0xff] %v2693
    %2918 = vst [vmem:[#allocation5 + $0x448] sm:$0xff] %v2694
    %2919 = vst [vmem:[#allocation5 + $0x450] sm:$0xff] %v2695
    %2920 = vst [vmem:[#allocation5 + $0x458] sm:$0xff] %v2696
    %2921 = vst [vmem:[#allocation5 + $0x460] sm:$0xff] %v2697
    %2922 = vst [vmem:[#allocation5 + $0x468] sm:$0xff] %v2698
    %2923 = vst [vmem:[#allocation5 + $0x470] sm:$0xff] %v2699
    %2924 = vst [vmem:[#allocation5 + $0x478] sm:$0xff] %v2700
    %2925 = vst [vmem:[#allocation5 + $0x480] sm:$0xff] %v2701
    %2926 = vst [vmem:[#allocation5 + $0x488] sm:$0xff] %v2702
    %2927 = vst [vmem:[#allocation5 + $0x490] sm:$0xff] %v2703
    %2928 = vst [vmem:[#allocation5 + $0x498] sm:$0xff] %v2704
    %2929 = vst [vmem:[#allocation5 + $0x4a0] sm:$0xff] %v2705
    %2930 = vst [vmem:[#allocation5 + $0x4a8] sm:$0xff] %v2706
    %2931 = vst [vmem:[#allocation5 + $0x4b0] sm:$0xff] %v2707
    %2932 = vst [vmem:[#allocation5 + $0x4b8] sm:$0xff] %v2708
    %2933 = vst [vmem:[#allocation5 + $0x4c0] sm:$0xff] %v2709
    %2934 = vst [vmem:[#allocation5 + $0x4c8] sm:$0xff] %v2710
    %2935 = vst [vmem:[#allocation5 + $0x4d0] sm:$0xff] %v2711
    %2936 = vst [vmem:[#allocation5 + $0x4d8] sm:$0xff] %v2712
    %2937 = vst [vmem:[#allocation5 + $0x4e0] sm:$0xff] %v2713
    %2938 = vst [vmem:[#allocation5 + $0x4e8] sm:$0xff] %v2714
    %2939 = vst [vmem:[#allocation5 + $0x4f0] sm:$0xff] %v2715
    %2940 = vst [vmem:[#allocation5 + $0x4f8] sm:$0xff] %v2716
    %2941 = vst [vmem:[#allocation5 + $0x500] sm:$0xff] %v2717
    %2942 = vst [vmem:[#allocation5 + $0x508] sm:$0xff] %v2718
    %2943 = vst [vmem:[#allocation5 + $0x510] sm:$0xff] %v2719
    %2944 = vst [vmem:[#allocation5 + $0x518] sm:$0xff] %v2720
    %2945 = vst [vmem:[#allocation5 + $0x520] sm:$0xff] %v2721
    %2946 = vst [vmem:[#allocation5 + $0x528] sm:$0xff] %v2722
    %2947 = vst [vmem:[#allocation5 + $0x530] sm:$0xff] %v2723
    %2948 = vst [vmem:[#allocation5 + $0x538] sm:$0xff] %v2724
    %2949 = vst [vmem:[#allocation5 + $0x540] sm:$0xff] %v2725
    %2950 = vst [vmem:[#allocation5 + $0x548] sm:$0xff] %v2726
    %2951 = vst [vmem:[#allocation5 + $0x550] sm:$0xff] %v2727
    %2952 = vst [vmem:[#allocation5 + $0x558] sm:$0xff] %v2728
    %2953 = vst [vmem:[#allocation5 + $0x560] sm:$0xff] %v2729
    %2954 = vst [vmem:[#allocation5 + $0x568] sm:$0xff] %v2730
    %2955 = vst [vmem:[#allocation5 + $0x570] sm:$0xff] %v2731
    %2956 = vst [vmem:[#allocation5 + $0x578] sm:$0xff] %v2732
    %2957 = vst [vmem:[#allocation5 + $0x580] sm:$0xff] %v2733
    %2958 = vst [vmem:[#allocation5 + $0x588] sm:$0xff] %v2734
    %2959 = vst [vmem:[#allocation5 + $0x590] sm:$0xff] %v2735
    %2960 = vst [vmem:[#allocation5 + $0x598] sm:$0xff] %v2736
    %2961 = vst [vmem:[#allocation5 + $0x5a0] sm:$0xff] %v2737
    %2962 = vst [vmem:[#allocation5 + $0x5a8] sm:$0xff] %v2738
    %2963 = vst [vmem:[#allocation5 + $0x5b0] sm:$0xff] %v2739
    %2964 = vst [vmem:[#allocation5 + $0x5b8] sm:$0xff] %v2740
    %2965 = vst [vmem:[#allocation5 + $0x5c0] sm:$0xff] %v2741
    %2966 = vst [vmem:[#allocation5 + $0x5c8] sm:$0xff] %v2742
    %2967 = vst [vmem:[#allocation5 + $0x5d0] sm:$0xff] %v2743
    %2968 = vst [vmem:[#allocation5 + $0x5d8] sm:$0xff] %v2744
    %2969 = vst [vmem:[#allocation5 + $0x5e0] sm:$0xff] %v2745
    %2970 = vst [vmem:[#allocation5 + $0x5e8] sm:$0xff] %v2746
    %2971 = vst [vmem:[#allocation5 + $0x5f0] sm:$0xff] %v2747
    %2972 = vst [vmem:[#allocation5 + $0x5f8] sm:$0xff] %v2748
    %2973 = vst [vmem:[#allocation5 + $0x600] sm:$0xff] %v2749
    %2974 = vst [vmem:[#allocation5 + $0x608] sm:$0xff] %v2750
    %2975 = vst [vmem:[#allocation5 + $0x610] sm:$0xff] %v2751
    %2976 = vst [vmem:[#allocation5 + $0x618] sm:$0xff] %v2752
    %2977 = vst [vmem:[#allocation5 + $0x620] sm:$0xff] %v2753
    %2978 = vst [vmem:[#allocation5 + $0x628] sm:$0xff] %v2754
    %2979 = vst [vmem:[#allocation5 + $0x630] sm:$0xff] %v2755
    %2980 = vst [vmem:[#allocation5 + $0x638] sm:$0xff] %v2756
    %2981 = vst [vmem:[#allocation5 + $0x640] sm:$0xff] %v2757
    %2982 = vst [vmem:[#allocation5 + $0x648] sm:$0xff] %v2758
    %2983 = vst [vmem:[#allocation5 + $0x650] sm:$0xff] %v2759
    %2984 = vst [vmem:[#allocation5 + $0x658] sm:$0xff] %v2760
    %2985 = vst [vmem:[#allocation5 + $0x660] sm:$0xff] %v2761
    %2986 = vst [vmem:[#allocation5 + $0x668] sm:$0xff] %v2762
    %2987 = vst [vmem:[#allocation5 + $0x670] sm:$0xff] %v2763
    %2988 = vst [vmem:[#allocation5 + $0x678] sm:$0xff] %v2764
    %2989 = vst [vmem:[#allocation5 + $0x680] sm:$0xff] %v2765
    %2990 = vst [vmem:[#allocation5 + $0x688] sm:$0xff] %v2766
    %2991 = vst [vmem:[#allocation5 + $0x690] sm:$0xff] %v2767
    %2992 = vst [vmem:[#allocation5 + $0x698] sm:$0xff] %v2768
    %2993 = vst [vmem:[#allocation5 + $0x6a0] sm:$0xff] %v2769
    %2994 = vst [vmem:[#allocation5 + $0x6a8] sm:$0xff] %v2770
    %2995 = vst [vmem:[#allocation5 + $0x6b0] sm:$0xff] %v2771
    %2996 = vst [vmem:[#allocation5 + $0x6b8] sm:$0xff] %v2772
    %2997 = vst [vmem:[#allocation5 + $0x6c0] sm:$0xff] %v2773
    %2998 = vst [vmem:[#allocation5 + $0x6c8] sm:$0xff] %v2774
    %2999 = vst [vmem:[#allocation5 + $0x6d0] sm:$0xff] %v2775
    %3000 = vst [vmem:[#allocation5 + $0x6d8] sm:$0xff] %v2776
    %3001 = vst [vmem:[#allocation5 + $0x6e0] sm:$0xff] %v2777
    %3002 = vst [vmem:[#allocation5 + $0x6e8] sm:$0xff] %v2778
    %3003 = vst [vmem:[#allocation5 + $0x6f0] sm:$0xff] %v2779
    %3004 = vst [vmem:[#allocation5 + $0x6f8] sm:$0xff] %v2780
    // Predicated region
    $region26: #{tpu_custom_call.1} parent=1 // pred_check
      _
    $region27: #{tpu_custom_call.1} parent=1 // pred_check_branch
      %3006 = sbr.rel (0) target = $region29
    $region28: #{tpu_custom_call.1} parent=1 // pred_region
      %3008 = vsyncadd [#allocation4], 0
      %s3009 = sshll.u32 [#allocation5], 4
      %s3010 = int_to_ptr.vmem [resolvable:$true] %s3009
      %s3011 = sshll.u32 %s5, 4
      %s3012 = int_to_ptr.hbm [resolvable:$true] %s3011
      %3017 = dma.vmem_to_hbm [thread:$0]  %s3010, 28672, %s3012, [#allocation4], 896, 896, 56
    $region29: #{tpu_custom_call.1} parent=1 // pred_fallthru
      _
    // Predicated region
    $region30: #{tpu_custom_call.1} parent=1 // pred_check
      _
    $region31: #{tpu_custom_call.1} parent=1 // pred_check_branch
      %3019 = sbr.rel (0) target = $region33
    $region32: #{tpu_custom_call.1} parent=1 // pred_region
      %3021 = dma.done [#allocation4], 28672
    $region33: #{tpu_custom_call.1} parent=1 // pred_fallthru
      _
    %3022 = vsyncpa [#allocation3], 1
    %3023 = vsyncpa [#allocation4], 1

</llo_original>
